<compile_context>
chip_gen: v7x
topology: tpu7x:2x2x1
jax: 0.10.0
libtpu: 0.0.40
codegen_flags: <defaults>
</compile_context>

<pallas_src>
import functools

import jax
import jax.numpy as jnp
from jax import lax
from jax.experimental import pallas as pl
from jax.experimental.pallas import tpu as pltpu

_VMEM_BUDGET = 10 * 1024 * 1024        # tile-sizing budget: fits v5e/v6e/v7x scoped VMEM
_VMEM_LIMIT_BYTES = 32 * 1024 * 1024   # raise v5e's 16 MiB default; <= physical on all gens


def _downsample_kernel(x_ref, w_ref, b_ref, o_ref, *, c_in):
    """One (batch, row-tile, C_out-tile) block of the stride-2 3x3 conv.

    x_ref: (1, th+1, 4, Xp, C_in)  space-to-depth input slab (+1 row halo)
    w_ref: (9, C_in, tn)           per-tap weights, tap index = ky*3 + kx
    b_ref: (1, tn)                 bias (f32)
    o_ref: (1, th, W_out_p, tn)    output tile (f32, lane-dense tn)
    """
    _, th, w_out, tn = o_ref.shape
    acc = jnp.zeros((th * w_out, tn), jnp.float32)
    for ky in range(3):
        dy, py = (1, 0) if ky == 2 else (0, ky)
        for kx in range(3):
            dx, px = (1, 0) if kx == 2 else (0, kx)
            slot = 2 * py + px
            # contiguous window -> (th, w_out, c_in); no strided loads needed
            tap = x_ref[0, dy:dy + th, slot, dx:dx + w_out, :]
            acc += jnp.dot(
                tap.reshape(th * w_out, c_in),
                w_ref[ky * 3 + kx],
                preferred_element_type=jnp.float32,
            )
    acc += b_ref[...].astype(jnp.float32)          # bias once, in the epilogue
    o_ref[...] = acc.reshape(1, th, w_out, tn).astype(o_ref.dtype)


def _pick_tiles(h_out, w_out_p, c_in, c_out_p, itemsize, budget):
    """VMEM-budgeted (row tile, C_out tile) selection (double-buffered I/O)."""
    xp = w_out_p + 1

    def vmem_est(th, tn):
        slab = (th + 1) * 4 * xp * c_in * itemsize       # input block
        outb = th * w_out_p * tn * 4                     # output block (f32)
        wgt = 9 * c_in * tn * itemsize + tn * 4          # weights + bias (resident)
        temps = th * w_out_p * (tn + 2 * c_in) * 4       # f32 acc + tap temporaries
        return 2 * (slab + outb) + 2 * wgt + temps

    tn_cands = [t for t in range(c_out_p, 127, -128) if c_out_p % t == 0]
    th_cands = [t for t in (128, 96, 64, 48, 32, 24, 16, 8) if t <= h_out] or [h_out]
    for tn in tn_cands:                                  # prefer wide tn: fewer input re-reads
        for th in th_cands:                              # then the tallest row tile that fits
            if vmem_est(th, tn) <= budget:
                return th, tn
    return th_cands[-1], tn_cands[-1]


def downsample_forward(x_nchw, weight, bias, *, compute_dtype=jnp.float32):
    """nn.Conv2d(C_in, C_out, kernel_size=3, stride=2, padding=1) forward.

    Args:
      x_nchw: (B, C_in, H, W) input (PyTorch NCHW).
      weight: (C_out, C_in, 3, 3) conv weight (PyTorch layout).
      bias:   (C_out,) conv bias.
      compute_dtype: MXU operand dtype (f32 exact, bf16 fast); accumulation f32.

    Returns:
      (B, C_out, ceil(H/2), ceil(W/2)) float32 output, NCHW.
    """
    B, C_in, H, W = x_nchw.shape
    C_out = weight.shape[0]
    H_out = (H - 1) // 2 + 1
    W_out = (W - 1) // 2 + 1

    C_out_p = ((C_out + 127) // 128) * 128               # lane-dense output channels
    W_out_p = ((W_out + 7) // 8) * 8                     # sublane-aligned output width
    itemsize = jnp.dtype(compute_dtype).itemsize

    th, tn = _pick_tiles(H_out, W_out_p, C_in, C_out_p, itemsize, _VMEM_BUDGET)
    n_row_tiles = pl.cdiv(H_out, th)
    n_cout_tiles = C_out_p // tn
    H_out_p = n_row_tiles * th

    # s2d grid sizes: tile r needs rows [r*th, r*th+th] inclusive -> Yp rows total
    Yp = H_out_p + 1
    Xp = W_out_p + 1

    # ---- glue: pad + space-to-depth (single restructuring pass, ~1x traffic) ----
    x = x_nchw.astype(compute_dtype)
    xpad = jnp.pad(x, ((0, 0), (0, 0), (1, 2 * Yp - H - 1), (1, 2 * Xp - W - 1)))
    # (B, C, Yp, 2, Xp, 2) -> (B, Yp, py, px, Xp, C) -> (B, Yp, 4, Xp, C)
    xs = xpad.reshape(B, C_in, Yp, 2, Xp, 2)
    xs = jnp.transpose(xs, (0, 2, 3, 5, 4, 1)).reshape(B, Yp, 4, Xp, C_in)
    # haloed row tiles (duplicates 1 row per tile, ~1/th extra traffic)
    row_idx = jnp.arange(n_row_tiles)[:, None] * th + jnp.arange(th + 1)[None, :]
    xh = xs[:, row_idx].reshape(B * n_row_tiles, th + 1, 4, Xp, C_in)

    # per-tap weights (tap = ky*3 + kx), output channels padded to C_out_p
    w9 = jnp.transpose(weight, (2, 3, 1, 0)).reshape(9, C_in, C_out)
    w9 = jnp.pad(w9, ((0, 0), (0, 0), (0, C_out_p - C_out))).astype(compute_dtype)
    b_row = jnp.pad(bias, (0, C_out_p - C_out)).reshape(1, C_out_p).astype(jnp.float32)

    # ---- Pallas kernel: 9-tap matmul accumulation, lane-dense stores ----
    kernel = functools.partial(_downsample_kernel, c_in=C_in)
    out = pl.pallas_call(
        kernel,
        out_shape=jax.ShapeDtypeStruct((B, H_out_p, W_out_p, C_out_p), jnp.float32),
        grid=(B, n_cout_tiles, n_row_tiles),
        in_specs=[
            pl.BlockSpec((1, th + 1, 4, Xp, C_in),
                         lambda b, j, r: (b * n_row_tiles + r, 0, 0, 0, 0)),
            pl.BlockSpec((9, C_in, tn), lambda b, j, r: (0, 0, j)),
            pl.BlockSpec((1, tn), lambda b, j, r: (0, j)),
        ],
        out_specs=pl.BlockSpec((1, th, W_out_p, tn), lambda b, j, r: (b, r, 0, j)),
        compiler_params=pltpu.CompilerParams(
            dimension_semantics=("parallel", "parallel", "parallel"),
            vmem_limit_bytes=_VMEM_LIMIT_BYTES,
        ),
    )(xh, w9, b_row)

    # ---- glue: drop padding, back to NCHW (module interface requirement) ----
    out = out[:, :H_out, :W_out, :C_out]
    return jnp.transpose(out, (0, 3, 1, 2))


def _reference_conv(x_nchw, weight, bias):
    """Plain-JAX reference (lax.conv) for correctness checking."""
    x = jnp.transpose(x_nchw, (0, 2, 3, 1))                  # NHWC
    w_hwio = jnp.transpose(weight, (2, 3, 1, 0))             # HWIO
    y = lax.conv_general_dilated(
        x, w_hwio, window_strides=(2, 2), padding=((1, 1), (1, 1)),
        dimension_numbers=("NHWC", "HWIO", "NHWC"))
    y = y + bias.reshape(1, 1, 1, -1)
    return jnp.transpose(y, (0, 3, 1, 2))                    # NCHW


if __name__ == "__main__":
    # Small shapes consistent with the module's forward contract.
    B, C_in, H, W = 2, 4, 16, 16
    C_out = C_in  # DownSample default: out_channels = in_channels

    key = jax.random.PRNGKey(0)
    kx, kw, kb = jax.random.split(key, 3)

    x = jax.random.normal(kx, (B, C_in, H, W), dtype=jnp.float32)
    fan_in = C_in * 3 * 3
    bound = 1.0 / (fan_in ** 0.5)
    weight = jax.random.uniform(kw, (C_out, C_in, 3, 3), jnp.float32, -bound, bound)
    bias = jax.random.uniform(kb, (C_out,), jnp.float32, -bound, bound)

    fwd = jax.jit(downsample_forward)
    out = jax.block_until_ready(fwd(x, weight, bias))

    assert out.shape == (B, C_out, H // 2, W // 2), out.shape

    ref = _reference_conv(x, weight, bias)
    max_err = float(jnp.max(jnp.abs(out - ref)))
    assert jnp.allclose(out, ref, atol=1e-4, rtol=1e-4), max_err

    print("KERNEL_OK")
</pallas_src>

<mosaic_0001>
module attributes {stable_mosaic.version = 11 : i64} {
  func.func @_downsample_kernel(%arg0: i32, %arg1: i32, %arg2: i32, %arg3: memref<1x9x4x9x4xf32, #tpu.memory_space<vmem>>, %arg4: memref<9x4x128xf32, #tpu.memory_space<vmem>>, %arg5: memref<1x128xf32, #tpu.memory_space<vmem>>, %arg6: memref<1x8x8x128xf32, #tpu.memory_space<vmem>>) attributes {dimension_semantics = [#tpu.dimension_semantics<parallel>, #tpu.dimension_semantics<parallel>, #tpu.dimension_semantics<parallel>], iteration_bounds = array<i64: 2, 1, 1>, scalar_prefetch = 0 : i64, scratch_operands = 0 : i64, tpu.core_type = #tpu.core_type<tc>, window_params = [{transform_indices = @transform_0, window_bounds = array<i64: 1, 9, 4, 9, 4>}, {transform_indices = @transform_1, window_bounds = array<i64: 9, 4, 128>}, {transform_indices = @transform_2, window_bounds = array<i64: 1, 128>}, {transform_indices = @transform_3, window_bounds = array<i64: 1, 8, 8, 128>}]} {
    %cst = arith.constant 0.000000e+00 : f32
    %0 = vector.broadcast %cst : f32 to vector<64x128xf32>
    %c0 = arith.constant 0 : index
    %c0_0 = arith.constant 0 : index
    %c0_1 = arith.constant 0 : index
    %c0_2 = arith.constant 0 : index
    %c0_3 = arith.constant 0 : index
    %1 = vector.load %arg3[%c0, %c0_0, %c0_1, %c0_2, %c0_3] : memref<1x9x4x9x4xf32, #tpu.memory_space<vmem>>, vector<1x8x1x8x4xf32>
    %2 = vector.shape_cast %1 : vector<1x8x1x8x4xf32> to vector<8x8x4xf32>
    %3 = vector.shape_cast %2 : vector<8x8x4xf32> to vector<64x4xf32>
    %c0_4 = arith.constant 0 : index
    %c0_5 = arith.constant 0 : index
    %c0_6 = arith.constant 0 : index
    %4 = vector.load %arg4[%c0_4, %c0_5, %c0_6] : memref<9x4x128xf32, #tpu.memory_space<vmem>>, vector<1x4x128xf32>
    %5 = vector.shape_cast %4 : vector<1x4x128xf32> to vector<4x128xf32>
    %cst_7 = arith.constant dense<0.000000e+00> : vector<64x128xf32>
    %6 = tpu.matmul %3, %5, %cst_7 {dimension_numbers = #tpu.dot_dimension_numbers<[1], [0], [0], [1], [0, 0, 1, 1], [], []>} : vector<64x4xf32>, vector<4x128xf32>, vector<64x128xf32> -> vector<64x128xf32>
    %7 = arith.addf %0, %6 : vector<64x128xf32>
    %c0_8 = arith.constant 0 : index
    %c0_9 = arith.constant 0 : index
    %c1 = arith.constant 1 : index
    %c0_10 = arith.constant 0 : index
    %c0_11 = arith.constant 0 : index
    %8 = vector.load %arg3[%c0_8, %c0_9, %c1, %c0_10, %c0_11] : memref<1x9x4x9x4xf32, #tpu.memory_space<vmem>>, vector<1x8x1x8x4xf32>
    %9 = vector.shape_cast %8 : vector<1x8x1x8x4xf32> to vector<8x8x4xf32>
    %10 = vector.shape_cast %9 : vector<8x8x4xf32> to vector<64x4xf32>
    %c1_12 = arith.constant 1 : index
    %c0_13 = arith.constant 0 : index
    %c0_14 = arith.constant 0 : index
    %11 = vector.load %arg4[%c1_12, %c0_13, %c0_14] : memref<9x4x128xf32, #tpu.memory_space<vmem>>, vector<1x4x128xf32>
    %12 = vector.shape_cast %11 : vector<1x4x128xf32> to vector<4x128xf32>
    %cst_15 = arith.constant dense<0.000000e+00> : vector<64x128xf32>
    %13 = tpu.matmul %10, %12, %cst_15 {dimension_numbers = #tpu.dot_dimension_numbers<[1], [0], [0], [1], [0, 0, 1, 1], [], []>} : vector<64x4xf32>, vector<4x128xf32>, vector<64x128xf32> -> vector<64x128xf32>
    %14 = arith.addf %7, %13 : vector<64x128xf32>
    %c0_16 = arith.constant 0 : index
    %c0_17 = arith.constant 0 : index
    %c0_18 = arith.constant 0 : index
    %c1_19 = arith.constant 1 : index
    %c0_20 = arith.constant 0 : index
    %15 = vector.load %arg3[%c0_16, %c0_17, %c0_18, %c1_19, %c0_20] : memref<1x9x4x9x4xf32, #tpu.memory_space<vmem>>, vector<1x8x1x8x4xf32>
    %16 = vector.shape_cast %15 : vector<1x8x1x8x4xf32> to vector<8x8x4xf32>
    %17 = vector.shape_cast %16 : vector<8x8x4xf32> to vector<64x4xf32>
    %c2 = arith.constant 2 : index
    %c0_21 = arith.constant 0 : index
    %c0_22 = arith.constant 0 : index
    %18 = vector.load %arg4[%c2, %c0_21, %c0_22] : memref<9x4x128xf32, #tpu.memory_space<vmem>>, vector<1x4x128xf32>
    %19 = vector.shape_cast %18 : vector<1x4x128xf32> to vector<4x128xf32>
    %cst_23 = arith.constant dense<0.000000e+00> : vector<64x128xf32>
    %20 = tpu.matmul %17, %19, %cst_23 {dimension_numbers = #tpu.dot_dimension_numbers<[1], [0], [0], [1], [0, 0, 1, 1], [], []>} : vector<64x4xf32>, vector<4x128xf32>, vector<64x128xf32> -> vector<64x128xf32>
    %21 = arith.addf %14, %20 : vector<64x128xf32>
    %c0_24 = arith.constant 0 : index
    %c0_25 = arith.constant 0 : index
    %c2_26 = arith.constant 2 : index
    %c0_27 = arith.constant 0 : index
    %c0_28 = arith.constant 0 : index
    %22 = vector.load %arg3[%c0_24, %c0_25, %c2_26, %c0_27, %c0_28] : memref<1x9x4x9x4xf32, #tpu.memory_space<vmem>>, vector<1x8x1x8x4xf32>
    %23 = vector.shape_cast %22 : vector<1x8x1x8x4xf32> to vector<8x8x4xf32>
    %24 = vector.shape_cast %23 : vector<8x8x4xf32> to vector<64x4xf32>
    %c3 = arith.constant 3 : index
    %c0_29 = arith.constant 0 : index
    %c0_30 = arith.constant 0 : index
    %25 = vector.load %arg4[%c3, %c0_29, %c0_30] : memref<9x4x128xf32, #tpu.memory_space<vmem>>, vector<1x4x128xf32>
    %26 = vector.shape_cast %25 : vector<1x4x128xf32> to vector<4x128xf32>
    %cst_31 = arith.constant dense<0.000000e+00> : vector<64x128xf32>
    %27 = tpu.matmul %24, %26, %cst_31 {dimension_numbers = #tpu.dot_dimension_numbers<[1], [0], [0], [1], [0, 0, 1, 1], [], []>} : vector<64x4xf32>, vector<4x128xf32>, vector<64x128xf32> -> vector<64x128xf32>
    %28 = arith.addf %21, %27 : vector<64x128xf32>
    %c0_32 = arith.constant 0 : index
    %c0_33 = arith.constant 0 : index
    %c3_34 = arith.constant 3 : index
    %c0_35 = arith.constant 0 : index
    %c0_36 = arith.constant 0 : index
    %29 = vector.load %arg3[%c0_32, %c0_33, %c3_34, %c0_35, %c0_36] : memref<1x9x4x9x4xf32, #tpu.memory_space<vmem>>, vector<1x8x1x8x4xf32>
    %30 = vector.shape_cast %29 : vector<1x8x1x8x4xf32> to vector<8x8x4xf32>
    %31 = vector.shape_cast %30 : vector<8x8x4xf32> to vector<64x4xf32>
    %c4 = arith.constant 4 : index
    %c0_37 = arith.constant 0 : index
    %c0_38 = arith.constant 0 : index
    %32 = vector.load %arg4[%c4, %c0_37, %c0_38] : memref<9x4x128xf32, #tpu.memory_space<vmem>>, vector<1x4x128xf32>
    %33 = vector.shape_cast %32 : vector<1x4x128xf32> to vector<4x128xf32>
    %cst_39 = arith.constant dense<0.000000e+00> : vector<64x128xf32>
    %34 = tpu.matmul %31, %33, %cst_39 {dimension_numbers = #tpu.dot_dimension_numbers<[1], [0], [0], [1], [0, 0, 1, 1], [], []>} : vector<64x4xf32>, vector<4x128xf32>, vector<64x128xf32> -> vector<64x128xf32>
    %35 = arith.addf %28, %34 : vector<64x128xf32>
    %c0_40 = arith.constant 0 : index
    %c0_41 = arith.constant 0 : index
    %c2_42 = arith.constant 2 : index
    %c1_43 = arith.constant 1 : index
    %c0_44 = arith.constant 0 : index
    %36 = vector.load %arg3[%c0_40, %c0_41, %c2_42, %c1_43, %c0_44] : memref<1x9x4x9x4xf32, #tpu.memory_space<vmem>>, vector<1x8x1x8x4xf32>
    %37 = vector.shape_cast %36 : vector<1x8x1x8x4xf32> to vector<8x8x4xf32>
    %38 = vector.shape_cast %37 : vector<8x8x4xf32> to vector<64x4xf32>
    %c5 = arith.constant 5 : index
    %c0_45 = arith.constant 0 : index
    %c0_46 = arith.constant 0 : index
    %39 = vector.load %arg4[%c5, %c0_45, %c0_46] : memref<9x4x128xf32, #tpu.memory_space<vmem>>, vector<1x4x128xf32>
    %40 = vector.shape_cast %39 : vector<1x4x128xf32> to vector<4x128xf32>
    %cst_47 = arith.constant dense<0.000000e+00> : vector<64x128xf32>
    %41 = tpu.matmul %38, %40, %cst_47 {dimension_numbers = #tpu.dot_dimension_numbers<[1], [0], [0], [1], [0, 0, 1, 1], [], []>} : vector<64x4xf32>, vector<4x128xf32>, vector<64x128xf32> -> vector<64x128xf32>
    %42 = arith.addf %35, %41 : vector<64x128xf32>
    %c0_48 = arith.constant 0 : index
    %c1_49 = arith.constant 1 : index
    %c0_50 = arith.constant 0 : index
    %c0_51 = arith.constant 0 : index
    %c0_52 = arith.constant 0 : index
    %43 = vector.load %arg3[%c0_48, %c1_49, %c0_50, %c0_51, %c0_52] : memref<1x9x4x9x4xf32, #tpu.memory_space<vmem>>, vector<1x8x1x8x4xf32>
    %44 = vector.shape_cast %43 : vector<1x8x1x8x4xf32> to vector<8x8x4xf32>
    %45 = vector.shape_cast %44 : vector<8x8x4xf32> to vector<64x4xf32>
    %c6 = arith.constant 6 : index
    %c0_53 = arith.constant 0 : index
    %c0_54 = arith.constant 0 : index
    %46 = vector.load %arg4[%c6, %c0_53, %c0_54] : memref<9x4x128xf32, #tpu.memory_space<vmem>>, vector<1x4x128xf32>
    %47 = vector.shape_cast %46 : vector<1x4x128xf32> to vector<4x128xf32>
    %cst_55 = arith.constant dense<0.000000e+00> : vector<64x128xf32>
    %48 = tpu.matmul %45, %47, %cst_55 {dimension_numbers = #tpu.dot_dimension_numbers<[1], [0], [0], [1], [0, 0, 1, 1], [], []>} : vector<64x4xf32>, vector<4x128xf32>, vector<64x128xf32> -> vector<64x128xf32>
    %49 = arith.addf %42, %48 : vector<64x128xf32>
    %c0_56 = arith.constant 0 : index
    %c1_57 = arith.constant 1 : index
    %c1_58 = arith.constant 1 : index
    %c0_59 = arith.constant 0 : index
    %c0_60 = arith.constant 0 : index
    %50 = vector.load %arg3[%c0_56, %c1_57, %c1_58, %c0_59, %c0_60] : memref<1x9x4x9x4xf32, #tpu.memory_space<vmem>>, vector<1x8x1x8x4xf32>
    %51 = vector.shape_cast %50 : vector<1x8x1x8x4xf32> to vector<8x8x4xf32>
    %52 = vector.shape_cast %51 : vector<8x8x4xf32> to vector<64x4xf32>
    %c7 = arith.constant 7 : index
    %c0_61 = arith.constant 0 : index
    %c0_62 = arith.constant 0 : index
    %53 = vector.load %arg4[%c7, %c0_61, %c0_62] : memref<9x4x128xf32, #tpu.memory_space<vmem>>, vector<1x4x128xf32>
    %54 = vector.shape_cast %53 : vector<1x4x128xf32> to vector<4x128xf32>
    %cst_63 = arith.constant dense<0.000000e+00> : vector<64x128xf32>
    %55 = tpu.matmul %52, %54, %cst_63 {dimension_numbers = #tpu.dot_dimension_numbers<[1], [0], [0], [1], [0, 0, 1, 1], [], []>} : vector<64x4xf32>, vector<4x128xf32>, vector<64x128xf32> -> vector<64x128xf32>
    %56 = arith.addf %49, %55 : vector<64x128xf32>
    %c0_64 = arith.constant 0 : index
    %c1_65 = arith.constant 1 : index
    %c0_66 = arith.constant 0 : index
    %c1_67 = arith.constant 1 : index
    %c0_68 = arith.constant 0 : index
    %57 = vector.load %arg3[%c0_64, %c1_65, %c0_66, %c1_67, %c0_68] : memref<1x9x4x9x4xf32, #tpu.memory_space<vmem>>, vector<1x8x1x8x4xf32>
    %58 = vector.shape_cast %57 : vector<1x8x1x8x4xf32> to vector<8x8x4xf32>
    %59 = vector.shape_cast %58 : vector<8x8x4xf32> to vector<64x4xf32>
    %c8 = arith.constant 8 : index
    %c0_69 = arith.constant 0 : index
    %c0_70 = arith.constant 0 : index
    %60 = vector.load %arg4[%c8, %c0_69, %c0_70] : memref<9x4x128xf32, #tpu.memory_space<vmem>>, vector<1x4x128xf32>
    %61 = vector.shape_cast %60 : vector<1x4x128xf32> to vector<4x128xf32>
    %cst_71 = arith.constant dense<0.000000e+00> : vector<64x128xf32>
    %62 = tpu.matmul %59, %61, %cst_71 {dimension_numbers = #tpu.dot_dimension_numbers<[1], [0], [0], [1], [0, 0, 1, 1], [], []>} : vector<64x4xf32>, vector<4x128xf32>, vector<64x128xf32> -> vector<64x128xf32>
    %63 = arith.addf %56, %62 : vector<64x128xf32>
    %c0_72 = arith.constant 0 : index
    %c0_73 = arith.constant 0 : index
    %64 = vector.load %arg5[%c0_72, %c0_73] : memref<1x128xf32, #tpu.memory_space<vmem>>, vector<1x128xf32>
    %65 = vector.broadcast %64 : vector<1x128xf32> to vector<64x128xf32>
    %66 = arith.addf %63, %65 : vector<64x128xf32>
    %67 = vector.shape_cast %66 : vector<64x128xf32> to vector<1x8x8x128xf32>
    %c0_74 = arith.constant 0 : index
    %c0_75 = arith.constant 0 : index
    %c0_76 = arith.constant 0 : index
    %c0_77 = arith.constant 0 : index
    %68 = vector.load %arg6[%c0_74, %c0_75, %c0_76, %c0_77] : memref<1x8x8x128xf32, #tpu.memory_space<vmem>>, vector<1x8x8x128xf32>
    tpu.vector_store %arg6[%c0_74, %c0_75, %c0_76, %c0_77], %67 {strides = array<i32>} : memref<1x8x8x128xf32, #tpu.memory_space<vmem>>, vector<1x8x8x128xf32>,
    return
  }
  func.func @transform_0(%arg0: i32, %arg1: i32, %arg2: i32) -> (i32, i32, i32, i32, i32) {
    %c1_i32 = arith.constant 1 : i32
    %0 = arith.muli %arg0, %c1_i32 : i32
    %1 = arith.addi %0, %arg2 : i32
    %c0_i32 = arith.constant 0 : i32
    %c0_i32_0 = arith.constant 0 : i32
    %c0_i32_1 = arith.constant 0 : i32
    %c0_i32_2 = arith.constant 0 : i32
    %c0_i32_3 = arith.constant 0 : i32
    return %1, %c0_i32, %c0_i32_0, %c0_i32_1, %c0_i32_2 : i32, i32, i32, i32, i32
  }
  func.func @transform_1(%arg0: i32, %arg1: i32, %arg2: i32) -> (i32, i32, i32) {
    %c0_i32 = arith.constant 0 : i32
    %c0_i32_0 = arith.constant 0 : i32
    %c0_i32_1 = arith.constant 0 : i32
    return %c0_i32, %c0_i32_0, %arg1 : i32, i32, i32
  }
  func.func @transform_2(%arg0: i32, %arg1: i32, %arg2: i32) -> (i32, i32) {
    %c0_i32 = arith.constant 0 : i32
    %c0_i32_0 = arith.constant 0 : i32
    return %c0_i32, %arg1 : i32, i32
  }
  func.func @transform_3(%arg0: i32, %arg1: i32, %arg2: i32) -> (i32, i32, i32, i32) {
    %c0_i32 = arith.constant 0 : i32
    %c0_i32_0 = arith.constant 0 : i32
    return %arg0, %arg2, %c0_i32, %arg1 : i32, i32, i32, i32
  }
}

</mosaic_0001>

<llo_original>
// kernel: downsample_forward.1
$region0: #{downsample_forward.1}
  #allocation0 [shape = 'u32[]', space=smem, size = 0x4, offset = 0x4, fixed_abs, tag = 'smem constant byte address 0x4 - core index']
  #allocation1 [shape = 'u32[144,128]{1,0:T(1,128)}', space=vmem, size = 0x12000, scoped, tag = 'internal scratch']
  %s0 = inlined_call_operand.vmem [shape: f32[2,9,4,9,4], index: 0, kind: input, shape index: {}]
  %s1 = inlined_call_operand.vmem [shape: f32[9,4,128], index: 1, kind: input, shape index: {}]
  %s2 = inlined_call_operand.vmem [shape: f32[1,128], index: 2, kind: input, shape index: {}]
  %s3 = inlined_call_operand.vmem [shape: f32[2,8,8,128], index: 3, kind: output, shape index: {}]
  %s4 = sld [smem:[#allocation0]]
  $region45: #{downsample_forward.1} parent=0
    _
  %s6 = ssub.s32 1, %s4
  %s7 = scalar_select 0, %s6, %s4
  loop: start=0, step=1, limit=4
  $region2: #{downsample_forward.1} parent=0 // loop_pre_header
    _
  $region3: #{downsample_forward.1} parent=0 // loop_header
    %s9 = sphi 0, %s13
    %p10 = scmp.ge.s32.totalorder %s9, 4
    %s16 = sphi 0, %s35
    %s17 = sphi 0, %s31
    %s18 = sphi 0, %s27
    %s19 = sphi 0, %s16
    %s20 = sphi 0, %s17
    %s21 = sphi 0, %s18
    %s22 = sphi 0, %s19
    %s23 = sphi 0, %s20
    %s24 = sphi 0, %s21
    %s40 = sphi 0, %s42
    %s43 = sphi 0, %s40
    %s44 = sphi 0, %s43
    %s60 = sphi 0, %s44
    %s66 = sphi 0, %s68
    %s69 = sphi 0, %s66
    %s70 = sphi 0, %s69
    %s86 = sphi 0, %s70
    %s92 = sphi 0, %s94
    %s95 = sphi 0, %s92
    %s96 = sphi 0, %s95
    %s112 = sphi 0, %s96
    %s122 = sphi 0, %s124
    %s125 = sphi 0, %s122
    %s126 = sphi 0, %s125
    %s142 = sphi 0, %s126
  $region4: #{downsample_forward.1} parent=0 // loop_header_branch
    %12 = sbr.rel (%p10) target = $region8
  $region5: #{downsample_forward.1} parent=0 // loop_body
    %s14 = ssub.s32 %s9, 1
    %s15 = ssub.s32 %s9, 2
    %s25 = sadd.s32 1, %s18
    %p26 = scmp.ge.s32.totalorder %s25, 1
    %s27 = scalar_select %p26, 0, %s25
    %s28 = sadd.s32 1, %s17
    %s29 = scalar_select %p26, %s28, %s17
    %p30 = scmp.ge.s32.totalorder %s29, 1
    %s31 = scalar_select %p30, 0, %s29
    %s32 = sadd.s32 1, %s16
    %s33 = scalar_select %p30, %s32, %s16
    %p34 = scmp.ge.s32.totalorder %s33, 2
    %s35 = scalar_select %p34, 0, %s33
    %s36 = sadd.s32 %s16, %s18
    %s37 = sadd.s32 %s35, %s27
    %s38 = ssub.s32 %s36, %s37
    %p39 = scmp.eq.s32.totalorder %s38, 0
    %s41 = sadd.s32 %s40, 1
    %s42 = scalar_select %p39, %s40, %s41
    %p45 = pneg %p39
    %p46 = scmp.eq.s32.totalorder %s9, 1
    %p47 = por %p45, %p46
    %p48 = scmp.ne.s32.totalorder %s40, %s43
    %p49 = scmp.eq.s32.totalorder %s9, 0
    %p50 = por %p48, %p49
    %p51 = scmp.ne.s32.totalorder %s40, %s43
    %p52 = scmp.eq.s32.totalorder %s14, 1
    %p53 = por %p51, %p52
    %p54 = scmp.ne.s32.totalorder %s43, %s44
    %p55 = scmp.eq.s32.totalorder %s14, 0
    %p56 = por %p54, %p55
    %p57 = scmp.ne.s32.totalorder %s43, %s44
    %p58 = scmp.eq.s32.totalorder %s15, 1
    %p59 = por %p57, %p58
    %p61 = scmp.ne.s32.totalorder %s44, %s60
    %p62 = scmp.eq.s32.totalorder %s15, 0
    %p63 = por %p61, %p62
    %s64 = ssub.s32 %s17, %s31
    %p65 = scmp.eq.s32.totalorder %s64, 0
    %s67 = sadd.s32 %s66, 1
    %s68 = scalar_select %p65, %s66, %s67
    %p71 = pneg %p65
    %p72 = scmp.eq.s32.totalorder %s9, 1
    %p73 = por %p71, %p72
    %p74 = scmp.ne.s32.totalorder %s66, %s69
    %p75 = scmp.eq.s32.totalorder %s9, 0
    %p76 = por %p74, %p75
    %p77 = scmp.ne.s32.totalorder %s66, %s69
    %p78 = scmp.eq.s32.totalorder %s14, 1
    %p79 = por %p77, %p78
    %p80 = scmp.ne.s32.totalorder %s69, %s70
    %p81 = scmp.eq.s32.totalorder %s14, 0
    %p82 = por %p80, %p81
    %p83 = scmp.ne.s32.totalorder %s69, %s70
    %p84 = scmp.eq.s32.totalorder %s15, 1
    %p85 = por %p83, %p84
    %p87 = scmp.ne.s32.totalorder %s70, %s86
    %p88 = scmp.eq.s32.totalorder %s15, 0
    %p89 = por %p87, %p88
    %s90 = ssub.s32 %s17, %s31
    %p91 = scmp.eq.s32.totalorder %s90, 0
    %s93 = sadd.s32 %s92, 1
    %s94 = scalar_select %p91, %s92, %s93
    %p97 = pneg %p91
    %p98 = scmp.eq.s32.totalorder %s9, 1
    %p99 = por %p97, %p98
    %p100 = scmp.ne.s32.totalorder %s92, %s95
    %p101 = scmp.eq.s32.totalorder %s9, 0
    %p102 = por %p100, %p101
    %p103 = scmp.ne.s32.totalorder %s92, %s95
    %p104 = scmp.eq.s32.totalorder %s14, 1
    %p105 = por %p103, %p104
    %p106 = scmp.ne.s32.totalorder %s95, %s96
    %p107 = scmp.eq.s32.totalorder %s14, 0
    %p108 = por %p106, %p107
    %p109 = scmp.ne.s32.totalorder %s95, %s96
    %p110 = scmp.eq.s32.totalorder %s15, 1
    %p111 = por %p109, %p110
    %p113 = scmp.ne.s32.totalorder %s96, %s112
    %p114 = scmp.eq.s32.totalorder %s15, 0
    %p115 = por %p113, %p114
    %s116 = ssub.s32 %s16, %s35
    %s117 = ssub.s32 %s18, %s27
    %s118 = sor.u32 %s116, %s117
    %s119 = ssub.s32 %s17, %s31
    %s120 = sor.u32 %s118, %s119
    %p121 = scmp.eq.s32.totalorder %s120, 0
    %s123 = sadd.s32 %s122, 1
    %s124 = scalar_select %p121, %s122, %s123
    %p127 = pneg %p121
    %p128 = scmp.eq.s32.totalorder %s9, 1
    %p129 = por %p127, %p128
    %p130 = scmp.ne.s32.totalorder %s122, %s125
    %p131 = scmp.eq.s32.totalorder %s9, 0
    %p132 = por %p130, %p131
    %p133 = scmp.ne.s32.totalorder %s122, %s125
    %p134 = scmp.eq.s32.totalorder %s14, 1
    %p135 = por %p133, %p134
    %p136 = scmp.ne.s32.totalorder %s125, %s126
    %p137 = scmp.eq.s32.totalorder %s14, 0
    %p138 = por %p136, %p137
    %p139 = scmp.ne.s32.totalorder %s125, %s126
    %p140 = scmp.eq.s32.totalorder %s15, 1
    %p141 = por %p139, %p140
    %p143 = scmp.ne.s32.totalorder %s126, %s142
    %p144 = scmp.eq.s32.totalorder %s15, 0
    %p145 = por %p143, %p144
    %p146 = scmp.le.s32.totalorder 1, %s9
    %p147 = scmp.lt.s32.totalorder %s9, 3
    %p148 = pnand %p146, %p147
    %p149 = pneg %p148
    // Predicated region
    $region9: #{downsample_forward.1} parent=5 // pred_check
      _
    $region10: #{downsample_forward.1} parent=5 // pred_check_branch
      %151 = sbr.rel (%p148) target = $region12
    $region11: #{downsample_forward.1} parent=5 // pred_region
      %s152 = ssub.s32 %s9, 1
      // Predicated region
      $region13: #{downsample_forward.1} parent=11 // pred_check
        %p153 = pneg %p82
      $region14: #{downsample_forward.1} parent=11 // pred_check_branch
        %155 = sbr.rel (%p153) target = $region16
      $region15: #{downsample_forward.1} parent=11 // pred_region
        %p156 = scmp.lt.s32.totalorder %s20, 0
        %s157 = scalar_select %p156, %s20, 0
        %s158 = smul.addr %s157, 4
        %s159 = scalar_lea.vmem %s1, %s158
      $region16: #{downsample_forward.1} parent=11 // pred_fallthru
        _
      // Predicated region
      $region17: #{downsample_forward.1} parent=11 // pred_check
        %p160 = pneg %p108
      $region18: #{downsample_forward.1} parent=11 // pred_check_branch
        %162 = sbr.rel (%p160) target = $region20
      $region19: #{downsample_forward.1} parent=11 // pred_region
        %p163 = scmp.lt.s32.totalorder %s20, 0
        %s164 = scalar_select %p163, %s20, 0
        %s165 = scalar_lea.vmem %s2, %s164
      $region20: #{downsample_forward.1} parent=11 // pred_fallthru
        _
    $region12: #{downsample_forward.1} parent=5 // pred_fallthru
      _
    %p166 = scmp.lt.s32.totalorder %s9, 2
    // Predicated region
    $region21: #{downsample_forward.1} parent=5 // pred_check
      %p167 = pneg %p166
    $region22: #{downsample_forward.1} parent=5 // pred_check_branch
      %169 = sbr.rel (%p167) target = $region24
    $region23: #{downsample_forward.1} parent=5 // pred_region
      // Predicated region
      $region25: #{downsample_forward.1} parent=23 // pred_check
        %p170 = pneg %p50
      $region26: #{downsample_forward.1} parent=23 // pred_check_branch
        %172 = sbr.rel (%p170) target = $region28
      $region27: #{downsample_forward.1} parent=23 // pred_region
        %s173 = sadd.s32 %s16, %s18
        %p174 = scmp.lt.s32.totalorder %s173, 1
        %s175 = scalar_select %p174, %s173, 1
        %s176 = smul.addr %s175, 72
        %s177 = smul.addr %s176, 8
        %s178 = scalar_lea.vmem %s0, %s177
        %s179 = sadd.s32 %s16, %s18
      $region28: #{downsample_forward.1} parent=23 // pred_fallthru
        _
    $region24: #{downsample_forward.1} parent=5 // pred_fallthru
      _
    %p180 = scmp.le.s32.totalorder 1, %s9
    %p181 = scmp.lt.s32.totalorder %s9, 3
    %p182 = pnand %p180, %p181
    %p183 = pneg %p182
    // Predicated region
    $region29: #{downsample_forward.1} parent=5 // pred_check
      _
    $region30: #{downsample_forward.1} parent=5 // pred_check_branch
      %185 = sbr.rel (%p182) target = $region32
    $region31: #{downsample_forward.1} parent=5 // pred_region
      %s186 = ssub.s32 %s9, 1
      %s187 = sadd.s32 %s19, %s21
      %p188 = scmp.lt.s32.totalorder %s187, 1
      %s189 = scalar_select %p188, %s187, 1
      %s190 = smul.addr %s189, 72
      %s191 = smul.addr %s190, 8
      %s192 = scalar_lea.vmem %s0, %s191
      %p193 = pneg %p56
      %p194 = pneg %p53
      %p195 = scmp.lt.s32.totalorder %s20, 0
      %s196 = scalar_select %p195, %s20, 0
      %s197 = smul.addr %s196, 4
      %s198 = scalar_lea.vmem %s1, %s197
      %p199 = pneg %p82
      %p200 = pneg %p79
      %p201 = scmp.lt.s32.totalorder %s20, 0
      %s202 = scalar_select %p201, %s20, 0
      %s203 = scalar_lea.vmem %s2, %s202
      %p204 = pneg %p108
      %p205 = pneg %p105
      %p206 = pneg %p138
      %p207 = pneg %p135
      %s208 = smul.u32 8, %s21
      %p209 = scmp.lt.s32.totalorder %s19, 1
      %s210 = scalar_select %p209, %s19, 1
      %p211 = scmp.lt.s32.totalorder %s208, 7
      %s212 = scalar_select %p211, %s208, 7
      %p213 = scmp.lt.s32.totalorder %s20, 0
      %s214 = scalar_select %p213, %s20, 0
      %s215 = sadd.s32 %s214, %s212
      %s216 = smul.addr %s210, 8
      %s217 = sadd.s32 %s215, %s216
      %s218 = smul.addr %s217, 8
      %s219 = scalar_lea.vmem %s3, %s218
      %s220 = sadd.s32 %s19, %s21
      %p221 = scmp.lt.s32.totalorder %s220, 1
      %s222 = scalar_select %p221, %s220, 1
      %s223 = smul.addr %s222, 72
      %s224 = smul.addr %s223, 8
      %s225 = scalar_lea.vmem %s0, %s224
      %s226 = sadd.s32 %s19, %s21
      %p227 = scmp.lt.s32.totalorder %s20, 0
      %s228 = scalar_select %p227, %s20, 0
      %s229 = smul.addr %s228, 4
      %s230 = scalar_lea.vmem %s1, %s229
      %p231 = scmp.lt.s32.totalorder %s20, 0
      %s232 = scalar_select %p231, %s20, 0
      %s233 = scalar_lea.vmem %s2, %s232
      %s234 = smul.u32 8, %s21
      %p235 = scmp.lt.s32.totalorder %s19, 1
      %s236 = scalar_select %p235, %s19, 1
      %p237 = scmp.lt.s32.totalorder %s234, 7
      %s238 = scalar_select %p237, %s234, 7
      %p239 = scmp.lt.s32.totalorder %s20, 0
      %s240 = scalar_select %p239, %s20, 0
      %s241 = sadd.s32 %s240, %s238
      %s242 = smul.addr %s236, 8
      %s243 = sadd.s32 %s241, %s242
      %s244 = smul.addr %s243, 8
      %s245 = scalar_lea.vmem %s3, %s244
      %s246 = smul.u32 8, %s21
      %v247 = vld [vmem:[%s225] sm:$0xff]
      %v248 = vld [vmem:[%s225 + $0x40] sm:$0xff]
      %v249 = vld [vmem:[%s225 + $0x80] sm:$0xff]
      %v250 = vld [vmem:[%s225 + $0xc0] sm:$0xff]
      %v251 = vld [vmem:[%s225 + $0x100] sm:$0xff]
      %v252 = vld [vmem:[%s225 + $0x140] sm:$0xff]
      %v253 = vld [vmem:[%s225 + $0x180] sm:$0xff]
      %v254 = vld [vmem:[%s225 + $0x1c0] sm:$0xff]
      %v255 = vld [vmem:[%s230] sm:$0xf]
      %s256 = scalar_lea.vmem %s225, 16
      %v257 = vld [vmem:[%s256] sm:$0xff]
      %v258 = vld [vmem:[%s256 + $0x40] sm:$0xff]
      %v259 = vld [vmem:[%s256 + $0x80] sm:$0xff]
      %v260 = vld [vmem:[%s256 + $0xc0] sm:$0xff]
      %v261 = vld [vmem:[%s256 + $0x100] sm:$0xff]
      %v262 = vld [vmem:[%s256 + $0x140] sm:$0xff]
      %v263 = vld [vmem:[%s256 + $0x180] sm:$0xff]
      %v264 = vld [vmem:[%s256 + $0x1c0] sm:$0xff]
      %s265 = scalar_lea.vmem %s230, 4
      %v266 = vld [vmem:[%s265] sm:$0xf]
      %vm267 = vcmask 31744
      %v269 = vsel %vm267, %v257, 0
      %v272 = vsel %vm267, %v258, 0
      %v275 = vsel %vm267, %v259, 0
      %v278 = vsel %vm267, %v260, 0
      %v281 = vsel %vm267, %v261, 0
      %v284 = vsel %vm267, %v262, 0
      %v287 = vsel %vm267, %v263, 0
      %v290 = vsel %vm267, %v264, 0
      %vm292 = vcmask 1043456
      %v294 = vsel %vm292, %v266, 0
      %296 = vmatprep.subr.mxu0 0.0
      %297 = vmatpush1.msra.mxu0 %v294
      %298 = vmatprep.subr.mxu0 0.0
      %299 = vmatpush1.msra.mxu0 0.0
      %300 = vmatprep.subr.mxu0 0.0
      %301 = vmatpush1.msra.mxu0 0.0
      %302 = vmatprep.subr.mxu0 0.0
      %303 = vmatpush1.msra.mxu0 0.0
      %304 = vmatprep.subr.mxu0 0.0
      %305 = vmatpush1.msra.mxu0 0.0
      %306 = vmatprep.subr.mxu0 0.0
      %307 = vmatpush1.msra.mxu0 0.0
      %308 = vmatprep.subr.mxu0 0.0
      %309 = vmatpush1.msra.mxu0 0.0
      %310 = vmatprep.subr.mxu0 0.0
      %311 = vmatpush1.msra.mxu0 0.0
      %312 = vmatprep.subr.mxu0 0.0
      %313 = vmatpush1.msra.mxu0 0.0
      %314 = vmatprep.subr.mxu0 0.0
      %315 = vmatpush1.msra.mxu0 0.0
      %316 = vmatprep.subr.mxu0 0.0
      %317 = vmatpush1.msra.mxu0 0.0
      %318 = vmatprep.subr.mxu0 0.0
      %319 = vmatpush1.msra.mxu0 0.0
      %320 = vmatprep.subr.mxu0 0.0
      %321 = vmatpush1.msra.mxu0 0.0
      %322 = vmatprep.subr.mxu0 0.0
      %323 = vmatpush1.msra.mxu0 0.0
      %324 = vmatprep.subr.mxu0 0.0
      %325 = vmatpush1.msra.mxu0 0.0
      %326 = vmatprep.subr.mxu0 0.0
      %327 = vmatpush1.msra.mxu0 0.0
      %328 = vmatprep.subr.mxu0 0.0
      %329 = vmatpush1.msra.mxu0 0.0
      %330 = vmatprep.subr.mxu0 0.0
      %331 = vmatpush1.msra.mxu0 0.0
      %332 = vmatprep.subr.mxu0 0.0
      %333 = vmatpush1.msra.mxu0 0.0
      %334 = vmatprep.subr.mxu0 0.0
      %335 = vmatpush1.msra.mxu0 0.0
      %336 = vmatprep.subr.mxu0 0.0
      %337 = vmatpush1.msra.mxu0 0.0
      %338 = vmatprep.subr.mxu0 0.0
      %339 = vmatpush1.msra.mxu0 0.0
      %340 = vmatprep.subr.mxu0 0.0
      %341 = vmatpush1.msra.mxu0 0.0
      %342 = vmatprep.subr.mxu0 0.0
      %343 = vmatpush1.msra.mxu0 0.0
      %344 = vmatprep.subr.mxu0 0.0
      %345 = vmatpush1.msra.mxu0 0.0
      %346 = vmatprep.subr.mxu0 0.0
      %347 = vmatpush1.msra.mxu0 0.0
      %348 = vmatprep.subr.mxu0 0.0
      %349 = vmatpush1.msra.mxu0 0.0
      %350 = vmatprep.subr.mxu0 0.0
      %351 = vmatpush1.msra.mxu0 0.0
      %352 = vmatprep.subr.mxu0 0.0
      %353 = vmatpush1.msra.mxu0 0.0
      %354 = vmatprep.subr.mxu0 0.0
      %355 = vmatpush1.msra.mxu0 0.0
      %356 = vmatprep.subr.mxu0 0.0
      %357 = vmatpush1.msra.mxu0 0.0
      %358 = vmatprep.subr.mxu0 0.0
      %359 = vmatpush1.msra.mxu0 0.0
      %360 = vmatprep.mubr.f32.mxu0 0.0
      %361 = vmatmul.mubr.f32.gmra.mrb[0].mxu0 %v269
      %v362 = vpop.f32.mrb[0].mxu0
      %v363 = vadd.f32 0.0, %v362
      %v364 = vpop.f32.mrb[0].mxu0
      %365 = vmatprep.mubr.f32.mxu0 0.0
      %366 = vmatmul.mubr.f32.gmra.mrb[0].mxu0 %v272
      %v367 = vpop.f32.mrb[0].mxu0
      %v368 = vadd.f32 0.0, %v367
      %v369 = vpop.f32.mrb[0].mxu0
      %370 = vmatprep.mubr.f32.mxu0 0.0
      %371 = vmatmul.mubr.f32.gmra.mrb[0].mxu0 %v275
      %v372 = vpop.f32.mrb[0].mxu0
      %v373 = vadd.f32 0.0, %v372
      %v374 = vpop.f32.mrb[0].mxu0
      %375 = vmatprep.mubr.f32.mxu0 0.0
      %376 = vmatmul.mubr.f32.gmra.mrb[0].mxu0 %v278
      %v377 = vpop.f32.mrb[0].mxu0
      %v378 = vadd.f32 0.0, %v377
      %v379 = vpop.f32.mrb[0].mxu0
      %380 = vmatprep.mubr.f32.mxu0 0.0
      %381 = vmatmul.mubr.f32.gmra.mrb[0].mxu0 %v281
      %v382 = vpop.f32.mrb[0].mxu0
      %v383 = vadd.f32 0.0, %v382
      %v384 = vpop.f32.mrb[0].mxu0
      %385 = vmatprep.mubr.f32.mxu0 0.0
      %386 = vmatmul.mubr.f32.gmra.mrb[0].mxu0 %v284
      %v387 = vpop.f32.mrb[0].mxu0
      %v388 = vadd.f32 0.0, %v387
      %v389 = vpop.f32.mrb[0].mxu0
      %390 = vmatprep.mubr.f32.mxu0 0.0
      %391 = vmatmul.mubr.f32.gmra.mrb[0].mxu0 %v287
      %v392 = vpop.f32.mrb[0].mxu0
      %v393 = vadd.f32 0.0, %v392
      %v394 = vpop.f32.mrb[0].mxu0
      %395 = vmatprep.mubr.f32.mxu0 0.0
      %396 = vmatmul.mubr.f32.gmra.mrb[0].mxu0 %v290
      %v397 = vpop.f32.mrb[0].mxu0
      %v398 = vadd.f32 0.0, %v397
      %v399 = vpop.f32.mrb[0].mxu0
      %400 = vdwg.mxu0
      %v402 = vsel %vm267, %v247, 0
      %v405 = vsel %vm267, %v248, 0
      %v408 = vsel %vm267, %v249, 0
      %v411 = vsel %vm267, %v250, 0
      %v414 = vsel %vm267, %v251, 0
      %v417 = vsel %vm267, %v252, 0
      %v420 = vsel %vm267, %v253, 0
      %v423 = vsel %vm267, %v254, 0
      %v426 = vsel %vm292, %v255, 0
      %428 = vmatprep.subr.mxu0 0.0
      %429 = vmatpush1.msra.mxu0 %v426
      %430 = vmatprep.subr.mxu0 0.0
      %431 = vmatpush1.msra.mxu0 0.0
      %432 = vmatprep.subr.mxu0 0.0
      %433 = vmatpush1.msra.mxu0 0.0
      %434 = vmatprep.subr.mxu0 0.0
      %435 = vmatpush1.msra.mxu0 0.0
      %436 = vmatprep.subr.mxu0 0.0
      %437 = vmatpush1.msra.mxu0 0.0
      %438 = vmatprep.subr.mxu0 0.0
      %439 = vmatpush1.msra.mxu0 0.0
      %440 = vmatprep.subr.mxu0 0.0
      %441 = vmatpush1.msra.mxu0 0.0
      %442 = vmatprep.subr.mxu0 0.0
      %443 = vmatpush1.msra.mxu0 0.0
      %444 = vmatprep.subr.mxu0 0.0
      %445 = vmatpush1.msra.mxu0 0.0
      %446 = vmatprep.subr.mxu0 0.0
      %447 = vmatpush1.msra.mxu0 0.0
      %448 = vmatprep.subr.mxu0 0.0
      %449 = vmatpush1.msra.mxu0 0.0
      %450 = vmatprep.subr.mxu0 0.0
      %451 = vmatpush1.msra.mxu0 0.0
      %452 = vmatprep.subr.mxu0 0.0
      %453 = vmatpush1.msra.mxu0 0.0
      %454 = vmatprep.subr.mxu0 0.0
      %455 = vmatpush1.msra.mxu0 0.0
      %456 = vmatprep.subr.mxu0 0.0
      %457 = vmatpush1.msra.mxu0 0.0
      %458 = vmatprep.subr.mxu0 0.0
      %459 = vmatpush1.msra.mxu0 0.0
      %460 = vmatprep.subr.mxu0 0.0
      %461 = vmatpush1.msra.mxu0 0.0
      %462 = vmatprep.subr.mxu0 0.0
      %463 = vmatpush1.msra.mxu0 0.0
      %464 = vmatprep.subr.mxu0 0.0
      %465 = vmatpush1.msra.mxu0 0.0
      %466 = vmatprep.subr.mxu0 0.0
      %467 = vmatpush1.msra.mxu0 0.0
      %468 = vmatprep.subr.mxu0 0.0
      %469 = vmatpush1.msra.mxu0 0.0
      %470 = vmatprep.subr.mxu0 0.0
      %471 = vmatpush1.msra.mxu0 0.0
      %472 = vmatprep.subr.mxu0 0.0
      %473 = vmatpush1.msra.mxu0 0.0
      %474 = vmatprep.subr.mxu0 0.0
      %475 = vmatpush1.msra.mxu0 0.0
      %476 = vmatprep.subr.mxu0 0.0
      %477 = vmatpush1.msra.mxu0 0.0
      %478 = vmatprep.subr.mxu0 0.0
      %479 = vmatpush1.msra.mxu0 0.0
      %480 = vmatprep.subr.mxu0 0.0
      %481 = vmatpush1.msra.mxu0 0.0
      %482 = vmatprep.subr.mxu0 0.0
      %483 = vmatpush1.msra.mxu0 0.0
      %484 = vmatprep.subr.mxu0 0.0
      %485 = vmatpush1.msra.mxu0 0.0
      %486 = vmatprep.subr.mxu0 0.0
      %487 = vmatpush1.msra.mxu0 0.0
      %488 = vmatprep.subr.mxu0 0.0
      %489 = vmatpush1.msra.mxu0 0.0
      %490 = vmatprep.subr.mxu0 0.0
      %491 = vmatpush1.msra.mxu0 0.0
      %492 = vmatprep.mubr.f32.mxu0 0.0
      %493 = vmatmul.mubr.f32.gmra.mrb[0].mxu0 %v402
      %v494 = vpop.f32.mrb[0].mxu0
      %v495 = vadd.f32 %v363, %v494
      %v496 = vpop.f32.mrb[0].mxu0
      %497 = vmatprep.mubr.f32.mxu0 0.0
      %498 = vmatmul.mubr.f32.gmra.mrb[0].mxu0 %v405
      %v499 = vpop.f32.mrb[0].mxu0
      %v500 = vadd.f32 %v368, %v499
      %v501 = vpop.f32.mrb[0].mxu0
      %502 = vmatprep.mubr.f32.mxu0 0.0
      %503 = vmatmul.mubr.f32.gmra.mrb[0].mxu0 %v408
      %v504 = vpop.f32.mrb[0].mxu0
      %v505 = vadd.f32 %v373, %v504
      %v506 = vpop.f32.mrb[0].mxu0
      %507 = vmatprep.mubr.f32.mxu0 0.0
      %508 = vmatmul.mubr.f32.gmra.mrb[0].mxu0 %v411
      %v509 = vpop.f32.mrb[0].mxu0
      %v510 = vadd.f32 %v378, %v509
      %v511 = vpop.f32.mrb[0].mxu0
      %512 = vmatprep.mubr.f32.mxu0 0.0
      %513 = vmatmul.mubr.f32.gmra.mrb[0].mxu0 %v414
      %v514 = vpop.f32.mrb[0].mxu0
      %v515 = vadd.f32 %v383, %v514
      %v516 = vpop.f32.mrb[0].mxu0
      %517 = vmatprep.mubr.f32.mxu0 0.0
      %518 = vmatmul.mubr.f32.gmra.mrb[0].mxu0 %v417
      %v519 = vpop.f32.mrb[0].mxu0
      %v520 = vadd.f32 %v388, %v519
      %v521 = vpop.f32.mrb[0].mxu0
      %522 = vmatprep.mubr.f32.mxu0 0.0
      %523 = vmatmul.mubr.f32.gmra.mrb[0].mxu0 %v420
      %v524 = vpop.f32.mrb[0].mxu0
      %v525 = vadd.f32 %v393, %v524
      %v526 = vpop.f32.mrb[0].mxu0
      %527 = vmatprep.mubr.f32.mxu0 0.0
      %528 = vmatmul.mubr.f32.gmra.mrb[0].mxu0 %v423
      %v529 = vpop.f32.mrb[0].mxu0
      %v530 = vadd.f32 %v398, %v529
      %v531 = vpop.f32.mrb[0].mxu0
      %532 = vdwg.mxu0
      %v533 = vld [vmem:[%s225 + $0x1] sm:$0xff]
      %v534 = vld [vmem:[%s225 + $0x41] sm:$0xff]
      %v535 = vld [vmem:[%s225 + $0x81] sm:$0xff]
      %v536 = vld [vmem:[%s225 + $0xc1] sm:$0xff]
      %v537 = vld [vmem:[%s225 + $0x101] sm:$0xff]
      %v538 = vld [vmem:[%s225 + $0x141] sm:$0xff]
      %v539 = vld [vmem:[%s225 + $0x181] sm:$0xff]
      %v540 = vld [vmem:[%s225 + $0x1c1] sm:$0xff]
      %s541 = scalar_lea.vmem %s230, 8
      %v542 = vld [vmem:[%s541] sm:$0xf]
      %v544 = vsel %vm267, %v533, 0
      %v547 = vsel %vm267, %v534, 0
      %v550 = vsel %vm267, %v535, 0
      %v553 = vsel %vm267, %v536, 0
      %v556 = vsel %vm267, %v537, 0
      %v559 = vsel %vm267, %v538, 0
      %v562 = vsel %vm267, %v539, 0
      %v565 = vsel %vm267, %v540, 0
      %v568 = vsel %vm292, %v542, 0
      %570 = vmatprep.subr.mxu0 0.0
      %571 = vmatpush1.msra.mxu0 %v568
      %572 = vmatprep.subr.mxu0 0.0
      %573 = vmatpush1.msra.mxu0 0.0
      %574 = vmatprep.subr.mxu0 0.0
      %575 = vmatpush1.msra.mxu0 0.0
      %576 = vmatprep.subr.mxu0 0.0
      %577 = vmatpush1.msra.mxu0 0.0
      %578 = vmatprep.subr.mxu0 0.0
      %579 = vmatpush1.msra.mxu0 0.0
      %580 = vmatprep.subr.mxu0 0.0
      %581 = vmatpush1.msra.mxu0 0.0
      %582 = vmatprep.subr.mxu0 0.0
      %583 = vmatpush1.msra.mxu0 0.0
      %584 = vmatprep.subr.mxu0 0.0
      %585 = vmatpush1.msra.mxu0 0.0
      %586 = vmatprep.subr.mxu0 0.0
      %587 = vmatpush1.msra.mxu0 0.0
      %588 = vmatprep.subr.mxu0 0.0
      %589 = vmatpush1.msra.mxu0 0.0
      %590 = vmatprep.subr.mxu0 0.0
      %591 = vmatpush1.msra.mxu0 0.0
      %592 = vmatprep.subr.mxu0 0.0
      %593 = vmatpush1.msra.mxu0 0.0
      %594 = vmatprep.subr.mxu0 0.0
      %595 = vmatpush1.msra.mxu0 0.0
      %596 = vmatprep.subr.mxu0 0.0
      %597 = vmatpush1.msra.mxu0 0.0
      %598 = vmatprep.subr.mxu0 0.0
      %599 = vmatpush1.msra.mxu0 0.0
      %600 = vmatprep.subr.mxu0 0.0
      %601 = vmatpush1.msra.mxu0 0.0
      %602 = vmatprep.subr.mxu0 0.0
      %603 = vmatpush1.msra.mxu0 0.0
      %604 = vmatprep.subr.mxu0 0.0
      %605 = vmatpush1.msra.mxu0 0.0
      %606 = vmatprep.subr.mxu0 0.0
      %607 = vmatpush1.msra.mxu0 0.0
      %608 = vmatprep.subr.mxu0 0.0
      %609 = vmatpush1.msra.mxu0 0.0
      %610 = vmatprep.subr.mxu0 0.0
      %611 = vmatpush1.msra.mxu0 0.0
      %612 = vmatprep.subr.mxu0 0.0
      %613 = vmatpush1.msra.mxu0 0.0
      %614 = vmatprep.subr.mxu0 0.0
      %615 = vmatpush1.msra.mxu0 0.0
      %616 = vmatprep.subr.mxu0 0.0
      %617 = vmatpush1.msra.mxu0 0.0
      %618 = vmatprep.subr.mxu0 0.0
      %619 = vmatpush1.msra.mxu0 0.0
      %620 = vmatprep.subr.mxu0 0.0
      %621 = vmatpush1.msra.mxu0 0.0
      %622 = vmatprep.subr.mxu0 0.0
      %623 = vmatpush1.msra.mxu0 0.0
      %624 = vmatprep.subr.mxu0 0.0
      %625 = vmatpush1.msra.mxu0 0.0
      %626 = vmatprep.subr.mxu0 0.0
      %627 = vmatpush1.msra.mxu0 0.0
      %628 = vmatprep.subr.mxu0 0.0
      %629 = vmatpush1.msra.mxu0 0.0
      %630 = vmatprep.subr.mxu0 0.0
      %631 = vmatpush1.msra.mxu0 0.0
      %632 = vmatprep.subr.mxu0 0.0
      %633 = vmatpush1.msra.mxu0 0.0
      %634 = vmatprep.mubr.f32.mxu0 0.0
      %635 = vmatmul.mubr.f32.gmra.mrb[0].mxu0 %v544
      %v636 = vpop.f32.mrb[0].mxu0
      %v637 = vadd.f32 0.0, %v636
      %v638 = vpop.f32.mrb[0].mxu0
      %639 = vmatprep.mubr.f32.mxu0 0.0
      %640 = vmatmul.mubr.f32.gmra.mrb[0].mxu0 %v547
      %v641 = vpop.f32.mrb[0].mxu0
      %v642 = vadd.f32 0.0, %v641
      %v643 = vpop.f32.mrb[0].mxu0
      %644 = vmatprep.mubr.f32.mxu0 0.0
      %645 = vmatmul.mubr.f32.gmra.mrb[0].mxu0 %v550
      %v646 = vpop.f32.mrb[0].mxu0
      %v647 = vadd.f32 0.0, %v646
      %v648 = vpop.f32.mrb[0].mxu0
      %649 = vmatprep.mubr.f32.mxu0 0.0
      %650 = vmatmul.mubr.f32.gmra.mrb[0].mxu0 %v553
      %v651 = vpop.f32.mrb[0].mxu0
      %v652 = vadd.f32 0.0, %v651
      %v653 = vpop.f32.mrb[0].mxu0
      %654 = vmatprep.mubr.f32.mxu0 0.0
      %655 = vmatmul.mubr.f32.gmra.mrb[0].mxu0 %v556
      %v656 = vpop.f32.mrb[0].mxu0
      %v657 = vadd.f32 0.0, %v656
      %v658 = vpop.f32.mrb[0].mxu0
      %659 = vmatprep.mubr.f32.mxu0 0.0
      %660 = vmatmul.mubr.f32.gmra.mrb[0].mxu0 %v559
      %v661 = vpop.f32.mrb[0].mxu0
      %v662 = vadd.f32 0.0, %v661
      %v663 = vpop.f32.mrb[0].mxu0
      %664 = vmatprep.mubr.f32.mxu0 0.0
      %665 = vmatmul.mubr.f32.gmra.mrb[0].mxu0 %v562
      %v666 = vpop.f32.mrb[0].mxu0
      %v667 = vadd.f32 0.0, %v666
      %v668 = vpop.f32.mrb[0].mxu0
      %669 = vmatprep.mubr.f32.mxu0 0.0
      %670 = vmatmul.mubr.f32.gmra.mrb[0].mxu0 %v565
      %v671 = vpop.f32.mrb[0].mxu0
      %v672 = vadd.f32 0.0, %v671
      %v673 = vpop.f32.mrb[0].mxu0
      %674 = vdwg.mxu0
      %v675 = vadd.f32 %v495, %v637
      %v676 = vadd.f32 %v500, %v642
      %v677 = vadd.f32 %v505, %v647
      %v678 = vadd.f32 %v510, %v652
      %v679 = vadd.f32 %v515, %v657
      %v680 = vadd.f32 %v520, %v662
      %v681 = vadd.f32 %v525, %v667
      %v682 = vadd.f32 %v530, %v672
      %s683 = scalar_lea.vmem %s225, 32
      %v684 = vld [vmem:[%s683] sm:$0xff]
      %v685 = vld [vmem:[%s683 + $0x40] sm:$0xff]
      %v686 = vld [vmem:[%s683 + $0x80] sm:$0xff]
      %v687 = vld [vmem:[%s683 + $0xc0] sm:$0xff]
      %v688 = vld [vmem:[%s683 + $0x100] sm:$0xff]
      %v689 = vld [vmem:[%s683 + $0x140] sm:$0xff]
      %v690 = vld [vmem:[%s683 + $0x180] sm:$0xff]
      %v691 = vld [vmem:[%s683 + $0x1c0] sm:$0xff]
      %s692 = scalar_lea.vmem %s230, 12
      %v693 = vld [vmem:[%s692] sm:$0xf]
      %v695 = vsel %vm267, %v684, 0
      %v698 = vsel %vm267, %v685, 0
      %v701 = vsel %vm267, %v686, 0
      %v704 = vsel %vm267, %v687, 0
      %v707 = vsel %vm267, %v688, 0
      %v710 = vsel %vm267, %v689, 0
      %v713 = vsel %vm267, %v690, 0
      %v716 = vsel %vm267, %v691, 0
      %v719 = vsel %vm292, %v693, 0
      %721 = vmatprep.subr.mxu0 0.0
      %722 = vmatpush1.msra.mxu0 %v719
      %723 = vmatprep.subr.mxu0 0.0
      %724 = vmatpush1.msra.mxu0 0.0
      %725 = vmatprep.subr.mxu0 0.0
      %726 = vmatpush1.msra.mxu0 0.0
      %727 = vmatprep.subr.mxu0 0.0
      %728 = vmatpush1.msra.mxu0 0.0
      %729 = vmatprep.subr.mxu0 0.0
      %730 = vmatpush1.msra.mxu0 0.0
      %731 = vmatprep.subr.mxu0 0.0
      %732 = vmatpush1.msra.mxu0 0.0
      %733 = vmatprep.subr.mxu0 0.0
      %734 = vmatpush1.msra.mxu0 0.0
      %735 = vmatprep.subr.mxu0 0.0
      %736 = vmatpush1.msra.mxu0 0.0
      %737 = vmatprep.subr.mxu0 0.0
      %738 = vmatpush1.msra.mxu0 0.0
      %739 = vmatprep.subr.mxu0 0.0
      %740 = vmatpush1.msra.mxu0 0.0
      %741 = vmatprep.subr.mxu0 0.0
      %742 = vmatpush1.msra.mxu0 0.0
      %743 = vmatprep.subr.mxu0 0.0
      %744 = vmatpush1.msra.mxu0 0.0
      %745 = vmatprep.subr.mxu0 0.0
      %746 = vmatpush1.msra.mxu0 0.0
      %747 = vmatprep.subr.mxu0 0.0
      %748 = vmatpush1.msra.mxu0 0.0
      %749 = vmatprep.subr.mxu0 0.0
      %750 = vmatpush1.msra.mxu0 0.0
      %751 = vmatprep.subr.mxu0 0.0
      %752 = vmatpush1.msra.mxu0 0.0
      %753 = vmatprep.subr.mxu0 0.0
      %754 = vmatpush1.msra.mxu0 0.0
      %755 = vmatprep.subr.mxu0 0.0
      %756 = vmatpush1.msra.mxu0 0.0
      %757 = vmatprep.subr.mxu0 0.0
      %758 = vmatpush1.msra.mxu0 0.0
      %759 = vmatprep.subr.mxu0 0.0
      %760 = vmatpush1.msra.mxu0 0.0
      %761 = vmatprep.subr.mxu0 0.0
      %762 = vmatpush1.msra.mxu0 0.0
      %763 = vmatprep.subr.mxu0 0.0
      %764 = vmatpush1.msra.mxu0 0.0
      %765 = vmatprep.subr.mxu0 0.0
      %766 = vmatpush1.msra.mxu0 0.0
      %767 = vmatprep.subr.mxu0 0.0
      %768 = vmatpush1.msra.mxu0 0.0
      %769 = vmatprep.subr.mxu0 0.0
      %770 = vmatpush1.msra.mxu0 0.0
      %771 = vmatprep.subr.mxu0 0.0
      %772 = vmatpush1.msra.mxu0 0.0
      %773 = vmatprep.subr.mxu0 0.0
      %774 = vmatpush1.msra.mxu0 0.0
      %775 = vmatprep.subr.mxu0 0.0
      %776 = vmatpush1.msra.mxu0 0.0
      %777 = vmatprep.subr.mxu0 0.0
      %778 = vmatpush1.msra.mxu0 0.0
      %779 = vmatprep.subr.mxu0 0.0
      %780 = vmatpush1.msra.mxu0 0.0
      %781 = vmatprep.subr.mxu0 0.0
      %782 = vmatpush1.msra.mxu0 0.0
      %783 = vmatprep.subr.mxu0 0.0
      %784 = vmatpush1.msra.mxu0 0.0
      %785 = vmatprep.mubr.f32.mxu0 0.0
      %786 = vmatmul.mubr.f32.gmra.mrb[0].mxu0 %v695
      %v787 = vpop.f32.mrb[0].mxu0
      %v788 = vadd.f32 0.0, %v787
      %v789 = vpop.f32.mrb[0].mxu0
      %790 = vmatprep.mubr.f32.mxu0 0.0
      %791 = vmatmul.mubr.f32.gmra.mrb[0].mxu0 %v698
      %v792 = vpop.f32.mrb[0].mxu0
      %v793 = vadd.f32 0.0, %v792
      %v794 = vpop.f32.mrb[0].mxu0
      %795 = vmatprep.mubr.f32.mxu0 0.0
      %796 = vmatmul.mubr.f32.gmra.mrb[0].mxu0 %v701
      %v797 = vpop.f32.mrb[0].mxu0
      %v798 = vadd.f32 0.0, %v797
      %v799 = vpop.f32.mrb[0].mxu0
      %800 = vmatprep.mubr.f32.mxu0 0.0
      %801 = vmatmul.mubr.f32.gmra.mrb[0].mxu0 %v704
      %v802 = vpop.f32.mrb[0].mxu0
      %v803 = vadd.f32 0.0, %v802
      %v804 = vpop.f32.mrb[0].mxu0
      %805 = vmatprep.mubr.f32.mxu0 0.0
      %806 = vmatmul.mubr.f32.gmra.mrb[0].mxu0 %v707
      %v807 = vpop.f32.mrb[0].mxu0
      %v808 = vadd.f32 0.0, %v807
      %v809 = vpop.f32.mrb[0].mxu0
      %810 = vmatprep.mubr.f32.mxu0 0.0
      %811 = vmatmul.mubr.f32.gmra.mrb[0].mxu0 %v710
      %v812 = vpop.f32.mrb[0].mxu0
      %v813 = vadd.f32 0.0, %v812
      %v814 = vpop.f32.mrb[0].mxu0
      %815 = vmatprep.mubr.f32.mxu0 0.0
      %816 = vmatmul.mubr.f32.gmra.mrb[0].mxu0 %v713
      %v817 = vpop.f32.mrb[0].mxu0
      %v818 = vadd.f32 0.0, %v817
      %v819 = vpop.f32.mrb[0].mxu0
      %820 = vmatprep.mubr.f32.mxu0 0.0
      %821 = vmatmul.mubr.f32.gmra.mrb[0].mxu0 %v716
      %v822 = vpop.f32.mrb[0].mxu0
      %v823 = vadd.f32 0.0, %v822
      %v824 = vpop.f32.mrb[0].mxu0
      %825 = vdwg.mxu0
      %v826 = vadd.f32 %v675, %v788
      %v827 = vadd.f32 %v676, %v793
      %v828 = vadd.f32 %v677, %v798
      %v829 = vadd.f32 %v678, %v803
      %v830 = vadd.f32 %v679, %v808
      %v831 = vadd.f32 %v680, %v813
      %v832 = vadd.f32 %v681, %v818
      %v833 = vadd.f32 %v682, %v823
      %s834 = scalar_lea.vmem %s225, 48
      %v835 = vld [vmem:[%s834] sm:$0xff]
      %v836 = vld [vmem:[%s834 + $0x40] sm:$0xff]
      %v837 = vld [vmem:[%s834 + $0x80] sm:$0xff]
      %v838 = vld [vmem:[%s834 + $0xc0] sm:$0xff]
      %v839 = vld [vmem:[%s834 + $0x100] sm:$0xff]
      %v840 = vld [vmem:[%s834 + $0x140] sm:$0xff]
      %v841 = vld [vmem:[%s834 + $0x180] sm:$0xff]
      %v842 = vld [vmem:[%s834 + $0x1c0] sm:$0xff]
      %s843 = scalar_lea.vmem %s230, 16
      %v844 = vld [vmem:[%s843] sm:$0xf]
      %v846 = vsel %vm267, %v835, 0
      %v849 = vsel %vm267, %v836, 0
      %v852 = vsel %vm267, %v837, 0
      %v855 = vsel %vm267, %v838, 0
      %v858 = vsel %vm267, %v839, 0
      %v861 = vsel %vm267, %v840, 0
      %v864 = vsel %vm267, %v841, 0
      %v867 = vsel %vm267, %v842, 0
      %v870 = vsel %vm292, %v844, 0
      %872 = vmatprep.subr.mxu0 0.0
      %873 = vmatpush1.msra.mxu0 %v870
      %874 = vmatprep.subr.mxu0 0.0
      %875 = vmatpush1.msra.mxu0 0.0
      %876 = vmatprep.subr.mxu0 0.0
      %877 = vmatpush1.msra.mxu0 0.0
      %878 = vmatprep.subr.mxu0 0.0
      %879 = vmatpush1.msra.mxu0 0.0
      %880 = vmatprep.subr.mxu0 0.0
      %881 = vmatpush1.msra.mxu0 0.0
      %882 = vmatprep.subr.mxu0 0.0
      %883 = vmatpush1.msra.mxu0 0.0
      %884 = vmatprep.subr.mxu0 0.0
      %885 = vmatpush1.msra.mxu0 0.0
      %886 = vmatprep.subr.mxu0 0.0
      %887 = vmatpush1.msra.mxu0 0.0
      %888 = vmatprep.subr.mxu0 0.0
      %889 = vmatpush1.msra.mxu0 0.0
      %890 = vmatprep.subr.mxu0 0.0
      %891 = vmatpush1.msra.mxu0 0.0
      %892 = vmatprep.subr.mxu0 0.0
      %893 = vmatpush1.msra.mxu0 0.0
      %894 = vmatprep.subr.mxu0 0.0
      %895 = vmatpush1.msra.mxu0 0.0
      %896 = vmatprep.subr.mxu0 0.0
      %897 = vmatpush1.msra.mxu0 0.0
      %898 = vmatprep.subr.mxu0 0.0
      %899 = vmatpush1.msra.mxu0 0.0
      %900 = vmatprep.subr.mxu0 0.0
      %901 = vmatpush1.msra.mxu0 0.0
      %902 = vmatprep.subr.mxu0 0.0
      %903 = vmatpush1.msra.mxu0 0.0
      %904 = vmatprep.subr.mxu0 0.0
      %905 = vmatpush1.msra.mxu0 0.0
      %906 = vmatprep.subr.mxu0 0.0
      %907 = vmatpush1.msra.mxu0 0.0
      %908 = vmatprep.subr.mxu0 0.0
      %909 = vmatpush1.msra.mxu0 0.0
      %910 = vmatprep.subr.mxu0 0.0
      %911 = vmatpush1.msra.mxu0 0.0
      %912 = vmatprep.subr.mxu0 0.0
      %913 = vmatpush1.msra.mxu0 0.0
      %914 = vmatprep.subr.mxu0 0.0
      %915 = vmatpush1.msra.mxu0 0.0
      %916 = vmatprep.subr.mxu0 0.0
      %917 = vmatpush1.msra.mxu0 0.0
      %918 = vmatprep.subr.mxu0 0.0
      %919 = vmatpush1.msra.mxu0 0.0
      %920 = vmatprep.subr.mxu0 0.0
      %921 = vmatpush1.msra.mxu0 0.0
      %922 = vmatprep.subr.mxu0 0.0
      %923 = vmatpush1.msra.mxu0 0.0
      %924 = vmatprep.subr.mxu0 0.0
      %925 = vmatpush1.msra.mxu0 0.0
      %926 = vmatprep.subr.mxu0 0.0
      %927 = vmatpush1.msra.mxu0 0.0
      %928 = vmatprep.subr.mxu0 0.0
      %929 = vmatpush1.msra.mxu0 0.0
      %930 = vmatprep.subr.mxu0 0.0
      %931 = vmatpush1.msra.mxu0 0.0
      %932 = vmatprep.subr.mxu0 0.0
      %933 = vmatpush1.msra.mxu0 0.0
      %934 = vmatprep.subr.mxu0 0.0
      %935 = vmatpush1.msra.mxu0 0.0
      %936 = vmatprep.mubr.f32.mxu0 0.0
      %937 = vmatmul.mubr.f32.gmra.mrb[0].mxu0 %v846
      %v938 = vpop.f32.mrb[0].mxu0
      %v939 = vadd.f32 0.0, %v938
      %v940 = vpop.f32.mrb[0].mxu0
      %941 = vmatprep.mubr.f32.mxu0 0.0
      %942 = vmatmul.mubr.f32.gmra.mrb[0].mxu0 %v849
      %v943 = vpop.f32.mrb[0].mxu0
      %v944 = vadd.f32 0.0, %v943
      %v945 = vpop.f32.mrb[0].mxu0
      %946 = vmatprep.mubr.f32.mxu0 0.0
      %947 = vmatmul.mubr.f32.gmra.mrb[0].mxu0 %v852
      %v948 = vpop.f32.mrb[0].mxu0
      %v949 = vadd.f32 0.0, %v948
      %v950 = vpop.f32.mrb[0].mxu0
      %951 = vmatprep.mubr.f32.mxu0 0.0
      %952 = vmatmul.mubr.f32.gmra.mrb[0].mxu0 %v855
      %v953 = vpop.f32.mrb[0].mxu0
      %v954 = vadd.f32 0.0, %v953
      %v955 = vpop.f32.mrb[0].mxu0
      %956 = vmatprep.mubr.f32.mxu0 0.0
      %957 = vmatmul.mubr.f32.gmra.mrb[0].mxu0 %v858
      %v958 = vpop.f32.mrb[0].mxu0
      %v959 = vadd.f32 0.0, %v958
      %v960 = vpop.f32.mrb[0].mxu0
      %961 = vmatprep.mubr.f32.mxu0 0.0
      %962 = vmatmul.mubr.f32.gmra.mrb[0].mxu0 %v861
      %v963 = vpop.f32.mrb[0].mxu0
      %v964 = vadd.f32 0.0, %v963
      %v965 = vpop.f32.mrb[0].mxu0
      %966 = vmatprep.mubr.f32.mxu0 0.0
      %967 = vmatmul.mubr.f32.gmra.mrb[0].mxu0 %v864
      %v968 = vpop.f32.mrb[0].mxu0
      %v969 = vadd.f32 0.0, %v968
      %v970 = vpop.f32.mrb[0].mxu0
      %971 = vmatprep.mubr.f32.mxu0 0.0
      %972 = vmatmul.mubr.f32.gmra.mrb[0].mxu0 %v867
      %v973 = vpop.f32.mrb[0].mxu0
      %v974 = vadd.f32 0.0, %v973
      %v975 = vpop.f32.mrb[0].mxu0
      %976 = vdwg.mxu0
      %v977 = vadd.f32 %v826, %v939
      %v978 = vadd.f32 %v827, %v944
      %v979 = vadd.f32 %v828, %v949
      %v980 = vadd.f32 %v829, %v954
      %v981 = vadd.f32 %v830, %v959
      %v982 = vadd.f32 %v831, %v964
      %v983 = vadd.f32 %v832, %v969
      %v984 = vadd.f32 %v833, %v974
      %v985 = vld [vmem:[%s683 + $0x1] sm:$0xff]
      %v986 = vld [vmem:[%s683 + $0x41] sm:$0xff]
      %v987 = vld [vmem:[%s683 + $0x81] sm:$0xff]
      %v988 = vld [vmem:[%s683 + $0xc1] sm:$0xff]
      %v989 = vld [vmem:[%s683 + $0x101] sm:$0xff]
      %v990 = vld [vmem:[%s683 + $0x141] sm:$0xff]
      %v991 = vld [vmem:[%s683 + $0x181] sm:$0xff]
      %v992 = vld [vmem:[%s683 + $0x1c1] sm:$0xff]
      %s993 = scalar_lea.vmem %s230, 20
      %v994 = vld [vmem:[%s993] sm:$0xf]
      %v996 = vsel %vm267, %v985, 0
      %v999 = vsel %vm267, %v986, 0
      %v1002 = vsel %vm267, %v987, 0
      %v1005 = vsel %vm267, %v988, 0
      %v1008 = vsel %vm267, %v989, 0
      %v1011 = vsel %vm267, %v990, 0
      %v1014 = vsel %vm267, %v991, 0
      %v1017 = vsel %vm267, %v992, 0
      %v1020 = vsel %vm292, %v994, 0
      %1022 = vmatprep.subr.mxu0 0.0
      %1023 = vmatpush1.msra.mxu0 %v1020
      %1024 = vmatprep.subr.mxu0 0.0
      %1025 = vmatpush1.msra.mxu0 0.0
      %1026 = vmatprep.subr.mxu0 0.0
      %1027 = vmatpush1.msra.mxu0 0.0
      %1028 = vmatprep.subr.mxu0 0.0
      %1029 = vmatpush1.msra.mxu0 0.0
      %1030 = vmatprep.subr.mxu0 0.0
      %1031 = vmatpush1.msra.mxu0 0.0
      %1032 = vmatprep.subr.mxu0 0.0
      %1033 = vmatpush1.msra.mxu0 0.0
      %1034 = vmatprep.subr.mxu0 0.0
      %1035 = vmatpush1.msra.mxu0 0.0
      %1036 = vmatprep.subr.mxu0 0.0
      %1037 = vmatpush1.msra.mxu0 0.0
      %1038 = vmatprep.subr.mxu0 0.0
      %1039 = vmatpush1.msra.mxu0 0.0
      %1040 = vmatprep.subr.mxu0 0.0
      %1041 = vmatpush1.msra.mxu0 0.0
      %1042 = vmatprep.subr.mxu0 0.0
      %1043 = vmatpush1.msra.mxu0 0.0
      %1044 = vmatprep.subr.mxu0 0.0
      %1045 = vmatpush1.msra.mxu0 0.0
      %1046 = vmatprep.subr.mxu0 0.0
      %1047 = vmatpush1.msra.mxu0 0.0
      %1048 = vmatprep.subr.mxu0 0.0
      %1049 = vmatpush1.msra.mxu0 0.0
      %1050 = vmatprep.subr.mxu0 0.0
      %1051 = vmatpush1.msra.mxu0 0.0
      %1052 = vmatprep.subr.mxu0 0.0
      %1053 = vmatpush1.msra.mxu0 0.0
      %1054 = vmatprep.subr.mxu0 0.0
      %1055 = vmatpush1.msra.mxu0 0.0
      %1056 = vmatprep.subr.mxu0 0.0
      %1057 = vmatpush1.msra.mxu0 0.0
      %1058 = vmatprep.subr.mxu0 0.0
      %1059 = vmatpush1.msra.mxu0 0.0
      %1060 = vmatprep.subr.mxu0 0.0
      %1061 = vmatpush1.msra.mxu0 0.0
      %1062 = vmatprep.subr.mxu0 0.0
      %1063 = vmatpush1.msra.mxu0 0.0
      %1064 = vmatprep.subr.mxu0 0.0
      %1065 = vmatpush1.msra.mxu0 0.0
      %1066 = vmatprep.subr.mxu0 0.0
      %1067 = vmatpush1.msra.mxu0 0.0
      %1068 = vmatprep.subr.mxu0 0.0
      %1069 = vmatpush1.msra.mxu0 0.0
      %1070 = vmatprep.subr.mxu0 0.0
      %1071 = vmatpush1.msra.mxu0 0.0
      %1072 = vmatprep.subr.mxu0 0.0
      %1073 = vmatpush1.msra.mxu0 0.0
      %1074 = vmatprep.subr.mxu0 0.0
      %1075 = vmatpush1.msra.mxu0 0.0
      %1076 = vmatprep.subr.mxu0 0.0
      %1077 = vmatpush1.msra.mxu0 0.0
      %1078 = vmatprep.subr.mxu0 0.0
      %1079 = vmatpush1.msra.mxu0 0.0
      %1080 = vmatprep.subr.mxu0 0.0
      %1081 = vmatpush1.msra.mxu0 0.0
      %1082 = vmatprep.subr.mxu0 0.0
      %1083 = vmatpush1.msra.mxu0 0.0
      %1084 = vmatprep.subr.mxu0 0.0
      %1085 = vmatpush1.msra.mxu0 0.0
      %1086 = vmatprep.mubr.f32.mxu0 0.0
      %1087 = vmatmul.mubr.f32.gmra.mrb[0].mxu0 %v996
      %v1088 = vpop.f32.mrb[0].mxu0
      %v1089 = vadd.f32 0.0, %v1088
      %v1090 = vpop.f32.mrb[0].mxu0
      %1091 = vmatprep.mubr.f32.mxu0 0.0
      %1092 = vmatmul.mubr.f32.gmra.mrb[0].mxu0 %v999
      %v1093 = vpop.f32.mrb[0].mxu0
      %v1094 = vadd.f32 0.0, %v1093
      %v1095 = vpop.f32.mrb[0].mxu0
      %1096 = vmatprep.mubr.f32.mxu0 0.0
      %1097 = vmatmul.mubr.f32.gmra.mrb[0].mxu0 %v1002
      %v1098 = vpop.f32.mrb[0].mxu0
      %v1099 = vadd.f32 0.0, %v1098
      %v1100 = vpop.f32.mrb[0].mxu0
      %1101 = vmatprep.mubr.f32.mxu0 0.0
      %1102 = vmatmul.mubr.f32.gmra.mrb[0].mxu0 %v1005
      %v1103 = vpop.f32.mrb[0].mxu0
      %v1104 = vadd.f32 0.0, %v1103
      %v1105 = vpop.f32.mrb[0].mxu0
      %1106 = vmatprep.mubr.f32.mxu0 0.0
      %1107 = vmatmul.mubr.f32.gmra.mrb[0].mxu0 %v1008
      %v1108 = vpop.f32.mrb[0].mxu0
      %v1109 = vadd.f32 0.0, %v1108
      %v1110 = vpop.f32.mrb[0].mxu0
      %1111 = vmatprep.mubr.f32.mxu0 0.0
      %1112 = vmatmul.mubr.f32.gmra.mrb[0].mxu0 %v1011
      %v1113 = vpop.f32.mrb[0].mxu0
      %v1114 = vadd.f32 0.0, %v1113
      %v1115 = vpop.f32.mrb[0].mxu0
      %1116 = vmatprep.mubr.f32.mxu0 0.0
      %1117 = vmatmul.mubr.f32.gmra.mrb[0].mxu0 %v1014
      %v1118 = vpop.f32.mrb[0].mxu0
      %v1119 = vadd.f32 0.0, %v1118
      %v1120 = vpop.f32.mrb[0].mxu0
      %1121 = vmatprep.mubr.f32.mxu0 0.0
      %1122 = vmatmul.mubr.f32.gmra.mrb[0].mxu0 %v1017
      %v1123 = vpop.f32.mrb[0].mxu0
      %v1124 = vadd.f32 0.0, %v1123
      %v1125 = vpop.f32.mrb[0].mxu0
      %1126 = vdwg.mxu0
      %v1127 = vadd.f32 %v977, %v1089
      %v1128 = vadd.f32 %v978, %v1094
      %v1129 = vadd.f32 %v979, %v1099
      %v1130 = vadd.f32 %v980, %v1104
      %v1131 = vadd.f32 %v981, %v1109
      %v1132 = vadd.f32 %v982, %v1114
      %v1133 = vadd.f32 %v983, %v1119
      %v1134 = vadd.f32 %v984, %v1124
      %s1135 = scalar_lea.vmem %s225, 64
      %v1136 = vld [vmem:[%s1135] sm:$0xff]
      %v1137 = vld [vmem:[%s1135 + $0x40] sm:$0xff]
      %v1138 = vld [vmem:[%s1135 + $0x80] sm:$0xff]
      %v1139 = vld [vmem:[%s1135 + $0xc0] sm:$0xff]
      %v1140 = vld [vmem:[%s1135 + $0x100] sm:$0xff]
      %v1141 = vld [vmem:[%s1135 + $0x140] sm:$0xff]
      %v1142 = vld [vmem:[%s1135 + $0x180] sm:$0xff]
      %v1143 = vld [vmem:[%s1135 + $0x1c0] sm:$0xff]
      %s1144 = scalar_lea.vmem %s230, 24
      %v1145 = vld [vmem:[%s1144] sm:$0xf]
      %v1147 = vsel %vm267, %v1136, 0
      %v1150 = vsel %vm267, %v1137, 0
      %v1153 = vsel %vm267, %v1138, 0
      %v1156 = vsel %vm267, %v1139, 0
      %v1159 = vsel %vm267, %v1140, 0
      %v1162 = vsel %vm267, %v1141, 0
      %v1165 = vsel %vm267, %v1142, 0
      %v1168 = vsel %vm267, %v1143, 0
      %v1171 = vsel %vm292, %v1145, 0
      %1173 = vmatprep.subr.mxu0 0.0
      %1174 = vmatpush1.msra.mxu0 %v1171
      %1175 = vmatprep.subr.mxu0 0.0
      %1176 = vmatpush1.msra.mxu0 0.0
      %1177 = vmatprep.subr.mxu0 0.0
      %1178 = vmatpush1.msra.mxu0 0.0
      %1179 = vmatprep.subr.mxu0 0.0
      %1180 = vmatpush1.msra.mxu0 0.0
      %1181 = vmatprep.subr.mxu0 0.0
      %1182 = vmatpush1.msra.mxu0 0.0
      %1183 = vmatprep.subr.mxu0 0.0
      %1184 = vmatpush1.msra.mxu0 0.0
      %1185 = vmatprep.subr.mxu0 0.0
      %1186 = vmatpush1.msra.mxu0 0.0
      %1187 = vmatprep.subr.mxu0 0.0
      %1188 = vmatpush1.msra.mxu0 0.0
      %1189 = vmatprep.subr.mxu0 0.0
      %1190 = vmatpush1.msra.mxu0 0.0
      %1191 = vmatprep.subr.mxu0 0.0
      %1192 = vmatpush1.msra.mxu0 0.0
      %1193 = vmatprep.subr.mxu0 0.0
      %1194 = vmatpush1.msra.mxu0 0.0
      %1195 = vmatprep.subr.mxu0 0.0
      %1196 = vmatpush1.msra.mxu0 0.0
      %1197 = vmatprep.subr.mxu0 0.0
      %1198 = vmatpush1.msra.mxu0 0.0
      %1199 = vmatprep.subr.mxu0 0.0
      %1200 = vmatpush1.msra.mxu0 0.0
      %1201 = vmatprep.subr.mxu0 0.0
      %1202 = vmatpush1.msra.mxu0 0.0
      %1203 = vmatprep.subr.mxu0 0.0
      %1204 = vmatpush1.msra.mxu0 0.0
      %1205 = vmatprep.subr.mxu0 0.0
      %1206 = vmatpush1.msra.mxu0 0.0
      %1207 = vmatprep.subr.mxu0 0.0
      %1208 = vmatpush1.msra.mxu0 0.0
      %1209 = vmatprep.subr.mxu0 0.0
      %1210 = vmatpush1.msra.mxu0 0.0
      %1211 = vmatprep.subr.mxu0 0.0
      %1212 = vmatpush1.msra.mxu0 0.0
      %1213 = vmatprep.subr.mxu0 0.0
      %1214 = vmatpush1.msra.mxu0 0.0
      %1215 = vmatprep.subr.mxu0 0.0
      %1216 = vmatpush1.msra.mxu0 0.0
      %1217 = vmatprep.subr.mxu0 0.0
      %1218 = vmatpush1.msra.mxu0 0.0
      %1219 = vmatprep.subr.mxu0 0.0
      %1220 = vmatpush1.msra.mxu0 0.0
      %1221 = vmatprep.subr.mxu0 0.0
      %1222 = vmatpush1.msra.mxu0 0.0
      %1223 = vmatprep.subr.mxu0 0.0
      %1224 = vmatpush1.msra.mxu0 0.0
      %1225 = vmatprep.subr.mxu0 0.0
      %1226 = vmatpush1.msra.mxu0 0.0
      %1227 = vmatprep.subr.mxu0 0.0
      %1228 = vmatpush1.msra.mxu0 0.0
      %1229 = vmatprep.subr.mxu0 0.0
      %1230 = vmatpush1.msra.mxu0 0.0
      %1231 = vmatprep.subr.mxu0 0.0
      %1232 = vmatpush1.msra.mxu0 0.0
      %1233 = vmatprep.subr.mxu0 0.0
      %1234 = vmatpush1.msra.mxu0 0.0
      %1235 = vmatprep.subr.mxu0 0.0
      %1236 = vmatpush1.msra.mxu0 0.0
      %1237 = vmatprep.mubr.f32.mxu0 0.0
      %1238 = vmatmul.mubr.f32.gmra.mrb[0].mxu0 %v1147
      %v1239 = vpop.f32.mrb[0].mxu0
      %v1240 = vadd.f32 0.0, %v1239
      %v1241 = vpop.f32.mrb[0].mxu0
      %1242 = vmatprep.mubr.f32.mxu0 0.0
      %1243 = vmatmul.mubr.f32.gmra.mrb[0].mxu0 %v1150
      %v1244 = vpop.f32.mrb[0].mxu0
      %v1245 = vadd.f32 0.0, %v1244
      %v1246 = vpop.f32.mrb[0].mxu0
      %1247 = vmatprep.mubr.f32.mxu0 0.0
      %1248 = vmatmul.mubr.f32.gmra.mrb[0].mxu0 %v1153
      %v1249 = vpop.f32.mrb[0].mxu0
      %v1250 = vadd.f32 0.0, %v1249
      %v1251 = vpop.f32.mrb[0].mxu0
      %1252 = vmatprep.mubr.f32.mxu0 0.0
      %1253 = vmatmul.mubr.f32.gmra.mrb[0].mxu0 %v1156
      %v1254 = vpop.f32.mrb[0].mxu0
      %v1255 = vadd.f32 0.0, %v1254
      %v1256 = vpop.f32.mrb[0].mxu0
      %1257 = vmatprep.mubr.f32.mxu0 0.0
      %1258 = vmatmul.mubr.f32.gmra.mrb[0].mxu0 %v1159
      %v1259 = vpop.f32.mrb[0].mxu0
      %v1260 = vadd.f32 0.0, %v1259
      %v1261 = vpop.f32.mrb[0].mxu0
      %1262 = vmatprep.mubr.f32.mxu0 0.0
      %1263 = vmatmul.mubr.f32.gmra.mrb[0].mxu0 %v1162
      %v1264 = vpop.f32.mrb[0].mxu0
      %v1265 = vadd.f32 0.0, %v1264
      %v1266 = vpop.f32.mrb[0].mxu0
      %1267 = vmatprep.mubr.f32.mxu0 0.0
      %1268 = vmatmul.mubr.f32.gmra.mrb[0].mxu0 %v1165
      %v1269 = vpop.f32.mrb[0].mxu0
      %v1270 = vadd.f32 0.0, %v1269
      %v1271 = vpop.f32.mrb[0].mxu0
      %1272 = vmatprep.mubr.f32.mxu0 0.0
      %1273 = vmatmul.mubr.f32.gmra.mrb[0].mxu0 %v1168
      %v1274 = vpop.f32.mrb[0].mxu0
      %v1275 = vadd.f32 0.0, %v1274
      %v1276 = vpop.f32.mrb[0].mxu0
      %1277 = vdwg.mxu0
      %v1278 = vadd.f32 %v1127, %v1240
      %v1279 = vadd.f32 %v1128, %v1245
      %v1280 = vadd.f32 %v1129, %v1250
      %v1281 = vadd.f32 %v1130, %v1255
      %v1282 = vadd.f32 %v1131, %v1260
      %v1283 = vadd.f32 %v1132, %v1265
      %v1284 = vadd.f32 %v1133, %v1270
      %v1285 = vadd.f32 %v1134, %v1275
      %s1286 = scalar_lea.vmem %s225, 80
      %v1287 = vld [vmem:[%s1286] sm:$0xff]
      %v1288 = vld [vmem:[%s1286 + $0x40] sm:$0xff]
      %v1289 = vld [vmem:[%s1286 + $0x80] sm:$0xff]
      %v1290 = vld [vmem:[%s1286 + $0xc0] sm:$0xff]
      %v1291 = vld [vmem:[%s1286 + $0x100] sm:$0xff]
      %v1292 = vld [vmem:[%s1286 + $0x140] sm:$0xff]
      %v1293 = vld [vmem:[%s1286 + $0x180] sm:$0xff]
      %v1294 = vld [vmem:[%s1286 + $0x1c0] sm:$0xff]
      %s1295 = scalar_lea.vmem %s230, 28
      %v1296 = vld [vmem:[%s1295] sm:$0xf]
      %v1298 = vsel %vm267, %v1287, 0
      %v1301 = vsel %vm267, %v1288, 0
      %v1304 = vsel %vm267, %v1289, 0
      %v1307 = vsel %vm267, %v1290, 0
      %v1310 = vsel %vm267, %v1291, 0
      %v1313 = vsel %vm267, %v1292, 0
      %v1316 = vsel %vm267, %v1293, 0
      %v1319 = vsel %vm267, %v1294, 0
      %v1322 = vsel %vm292, %v1296, 0
      %1324 = vmatprep.subr.mxu0 0.0
      %1325 = vmatpush1.msra.mxu0 %v1322
      %1326 = vmatprep.subr.mxu0 0.0
      %1327 = vmatpush1.msra.mxu0 0.0
      %1328 = vmatprep.subr.mxu0 0.0
      %1329 = vmatpush1.msra.mxu0 0.0
      %1330 = vmatprep.subr.mxu0 0.0
      %1331 = vmatpush1.msra.mxu0 0.0
      %1332 = vmatprep.subr.mxu0 0.0
      %1333 = vmatpush1.msra.mxu0 0.0
      %1334 = vmatprep.subr.mxu0 0.0
      %1335 = vmatpush1.msra.mxu0 0.0
      %1336 = vmatprep.subr.mxu0 0.0
      %1337 = vmatpush1.msra.mxu0 0.0
      %1338 = vmatprep.subr.mxu0 0.0
      %1339 = vmatpush1.msra.mxu0 0.0
      %1340 = vmatprep.subr.mxu0 0.0
      %1341 = vmatpush1.msra.mxu0 0.0
      %1342 = vmatprep.subr.mxu0 0.0
      %1343 = vmatpush1.msra.mxu0 0.0
      %1344 = vmatprep.subr.mxu0 0.0
      %1345 = vmatpush1.msra.mxu0 0.0
      %1346 = vmatprep.subr.mxu0 0.0
      %1347 = vmatpush1.msra.mxu0 0.0
      %1348 = vmatprep.subr.mxu0 0.0
      %1349 = vmatpush1.msra.mxu0 0.0
      %1350 = vmatprep.subr.mxu0 0.0
      %1351 = vmatpush1.msra.mxu0 0.0
      %1352 = vmatprep.subr.mxu0 0.0
      %1353 = vmatpush1.msra.mxu0 0.0
      %1354 = vmatprep.subr.mxu0 0.0
      %1355 = vmatpush1.msra.mxu0 0.0
      %1356 = vmatprep.subr.mxu0 0.0
      %1357 = vmatpush1.msra.mxu0 0.0
      %1358 = vmatprep.subr.mxu0 0.0
      %1359 = vmatpush1.msra.mxu0 0.0
      %1360 = vmatprep.subr.mxu0 0.0
      %1361 = vmatpush1.msra.mxu0 0.0
      %1362 = vmatprep.subr.mxu0 0.0
      %1363 = vmatpush1.msra.mxu0 0.0
      %1364 = vmatprep.subr.mxu0 0.0
      %1365 = vmatpush1.msra.mxu0 0.0
      %1366 = vmatprep.subr.mxu0 0.0
      %1367 = vmatpush1.msra.mxu0 0.0
      %1368 = vmatprep.subr.mxu0 0.0
      %1369 = vmatpush1.msra.mxu0 0.0
      %1370 = vmatprep.subr.mxu0 0.0
      %1371 = vmatpush1.msra.mxu0 0.0
      %1372 = vmatprep.subr.mxu0 0.0
      %1373 = vmatpush1.msra.mxu0 0.0
      %1374 = vmatprep.subr.mxu0 0.0
      %1375 = vmatpush1.msra.mxu0 0.0
      %1376 = vmatprep.subr.mxu0 0.0
      %1377 = vmatpush1.msra.mxu0 0.0
      %1378 = vmatprep.subr.mxu0 0.0
      %1379 = vmatpush1.msra.mxu0 0.0
      %1380 = vmatprep.subr.mxu0 0.0
      %1381 = vmatpush1.msra.mxu0 0.0
      %1382 = vmatprep.subr.mxu0 0.0
      %1383 = vmatpush1.msra.mxu0 0.0
      %1384 = vmatprep.subr.mxu0 0.0
      %1385 = vmatpush1.msra.mxu0 0.0
      %1386 = vmatprep.subr.mxu0 0.0
      %1387 = vmatpush1.msra.mxu0 0.0
      %1388 = vmatprep.mubr.f32.mxu0 0.0
      %1389 = vmatmul.mubr.f32.gmra.mrb[0].mxu0 %v1298
      %v1390 = vpop.f32.mrb[0].mxu0
      %v1391 = vadd.f32 0.0, %v1390
      %v1392 = vpop.f32.mrb[0].mxu0
      %1393 = vmatprep.mubr.f32.mxu0 0.0
      %1394 = vmatmul.mubr.f32.gmra.mrb[0].mxu0 %v1301
      %v1395 = vpop.f32.mrb[0].mxu0
      %v1396 = vadd.f32 0.0, %v1395
      %v1397 = vpop.f32.mrb[0].mxu0
      %1398 = vmatprep.mubr.f32.mxu0 0.0
      %1399 = vmatmul.mubr.f32.gmra.mrb[0].mxu0 %v1304
      %v1400 = vpop.f32.mrb[0].mxu0
      %v1401 = vadd.f32 0.0, %v1400
      %v1402 = vpop.f32.mrb[0].mxu0
      %1403 = vmatprep.mubr.f32.mxu0 0.0
      %1404 = vmatmul.mubr.f32.gmra.mrb[0].mxu0 %v1307
      %v1405 = vpop.f32.mrb[0].mxu0
      %v1406 = vadd.f32 0.0, %v1405
      %v1407 = vpop.f32.mrb[0].mxu0
      %1408 = vmatprep.mubr.f32.mxu0 0.0
      %1409 = vmatmul.mubr.f32.gmra.mrb[0].mxu0 %v1310
      %v1410 = vpop.f32.mrb[0].mxu0
      %v1411 = vadd.f32 0.0, %v1410
      %v1412 = vpop.f32.mrb[0].mxu0
      %1413 = vmatprep.mubr.f32.mxu0 0.0
      %1414 = vmatmul.mubr.f32.gmra.mrb[0].mxu0 %v1313
      %v1415 = vpop.f32.mrb[0].mxu0
      %v1416 = vadd.f32 0.0, %v1415
      %v1417 = vpop.f32.mrb[0].mxu0
      %1418 = vmatprep.mubr.f32.mxu0 0.0
      %1419 = vmatmul.mubr.f32.gmra.mrb[0].mxu0 %v1316
      %v1420 = vpop.f32.mrb[0].mxu0
      %v1421 = vadd.f32 0.0, %v1420
      %v1422 = vpop.f32.mrb[0].mxu0
      %1423 = vmatprep.mubr.f32.mxu0 0.0
      %1424 = vmatmul.mubr.f32.gmra.mrb[0].mxu0 %v1319
      %v1425 = vpop.f32.mrb[0].mxu0
      %v1426 = vadd.f32 0.0, %v1425
      %v1427 = vpop.f32.mrb[0].mxu0
      %1428 = vdwg.mxu0
      %v1429 = vadd.f32 %v1278, %v1391
      %v1430 = vadd.f32 %v1279, %v1396
      %v1431 = vadd.f32 %v1280, %v1401
      %v1432 = vadd.f32 %v1281, %v1406
      %v1433 = vadd.f32 %v1282, %v1411
      %v1434 = vadd.f32 %v1283, %v1416
      %v1435 = vadd.f32 %v1284, %v1421
      %v1436 = vadd.f32 %v1285, %v1426
      %v1437 = vld [vmem:[%s1135 + $0x1] sm:$0xff]
      %v1438 = vld [vmem:[%s1135 + $0x41] sm:$0xff]
      %v1439 = vld [vmem:[%s1135 + $0x81] sm:$0xff]
      %v1440 = vld [vmem:[%s1135 + $0xc1] sm:$0xff]
      %v1441 = vld [vmem:[%s1135 + $0x101] sm:$0xff]
      %v1442 = vld [vmem:[%s1135 + $0x141] sm:$0xff]
      %v1443 = vld [vmem:[%s1135 + $0x181] sm:$0xff]
      %v1444 = vld [vmem:[%s1135 + $0x1c1] sm:$0xff]
      %s1445 = scalar_lea.vmem %s230, 32
      %v1446 = vld [vmem:[%s1445] sm:$0xf]
      %v1448 = vsel %vm267, %v1437, 0
      %v1451 = vsel %vm267, %v1438, 0
      %v1454 = vsel %vm267, %v1439, 0
      %v1457 = vsel %vm267, %v1440, 0
      %v1460 = vsel %vm267, %v1441, 0
      %v1463 = vsel %vm267, %v1442, 0
      %v1466 = vsel %vm267, %v1443, 0
      %v1469 = vsel %vm267, %v1444, 0
      %v1472 = vsel %vm292, %v1446, 0
      %1474 = vmatprep.subr.mxu0 0.0
      %1475 = vmatpush1.msra.mxu0 %v1472
      %1476 = vmatprep.subr.mxu0 0.0
      %1477 = vmatpush1.msra.mxu0 0.0
      %1478 = vmatprep.subr.mxu0 0.0
      %1479 = vmatpush1.msra.mxu0 0.0
      %1480 = vmatprep.subr.mxu0 0.0
      %1481 = vmatpush1.msra.mxu0 0.0
      %1482 = vmatprep.subr.mxu0 0.0
      %1483 = vmatpush1.msra.mxu0 0.0
      %1484 = vmatprep.subr.mxu0 0.0
      %1485 = vmatpush1.msra.mxu0 0.0
      %1486 = vmatprep.subr.mxu0 0.0
      %1487 = vmatpush1.msra.mxu0 0.0
      %1488 = vmatprep.subr.mxu0 0.0
      %1489 = vmatpush1.msra.mxu0 0.0
      %1490 = vmatprep.subr.mxu0 0.0
      %1491 = vmatpush1.msra.mxu0 0.0
      %1492 = vmatprep.subr.mxu0 0.0
      %1493 = vmatpush1.msra.mxu0 0.0
      %1494 = vmatprep.subr.mxu0 0.0
      %1495 = vmatpush1.msra.mxu0 0.0
      %1496 = vmatprep.subr.mxu0 0.0
      %1497 = vmatpush1.msra.mxu0 0.0
      %1498 = vmatprep.subr.mxu0 0.0
      %1499 = vmatpush1.msra.mxu0 0.0
      %1500 = vmatprep.subr.mxu0 0.0
      %1501 = vmatpush1.msra.mxu0 0.0
      %1502 = vmatprep.subr.mxu0 0.0
      %1503 = vmatpush1.msra.mxu0 0.0
      %1504 = vmatprep.subr.mxu0 0.0
      %1505 = vmatpush1.msra.mxu0 0.0
      %1506 = vmatprep.subr.mxu0 0.0
      %1507 = vmatpush1.msra.mxu0 0.0
      %1508 = vmatprep.subr.mxu0 0.0
      %1509 = vmatpush1.msra.mxu0 0.0
      %1510 = vmatprep.subr.mxu0 0.0
      %1511 = vmatpush1.msra.mxu0 0.0
      %1512 = vmatprep.subr.mxu0 0.0
      %1513 = vmatpush1.msra.mxu0 0.0
      %1514 = vmatprep.subr.mxu0 0.0
      %1515 = vmatpush1.msra.mxu0 0.0
      %1516 = vmatprep.subr.mxu0 0.0
      %1517 = vmatpush1.msra.mxu0 0.0
      %1518 = vmatprep.subr.mxu0 0.0
      %1519 = vmatpush1.msra.mxu0 0.0
      %1520 = vmatprep.subr.mxu0 0.0
      %1521 = vmatpush1.msra.mxu0 0.0
      %1522 = vmatprep.subr.mxu0 0.0
      %1523 = vmatpush1.msra.mxu0 0.0
      %1524 = vmatprep.subr.mxu0 0.0
      %1525 = vmatpush1.msra.mxu0 0.0
      %1526 = vmatprep.subr.mxu0 0.0
      %1527 = vmatpush1.msra.mxu0 0.0
      %1528 = vmatprep.subr.mxu0 0.0
      %1529 = vmatpush1.msra.mxu0 0.0
      %1530 = vmatprep.subr.mxu0 0.0
      %1531 = vmatpush1.msra.mxu0 0.0
      %1532 = vmatprep.subr.mxu0 0.0
      %1533 = vmatpush1.msra.mxu0 0.0
      %1534 = vmatprep.subr.mxu0 0.0
      %1535 = vmatpush1.msra.mxu0 0.0
      %1536 = vmatprep.subr.mxu0 0.0
      %1537 = vmatpush1.msra.mxu0 0.0
      %1538 = vmatprep.mubr.f32.mxu0 0.0
      %1539 = vmatmul.mubr.f32.gmra.mrb[0].mxu0 %v1448
      %v1540 = vpop.f32.mrb[0].mxu0
      %v1541 = vadd.f32 0.0, %v1540
      %v1542 = vpop.f32.mrb[0].mxu0
      %1543 = vmatprep.mubr.f32.mxu0 0.0
      %1544 = vmatmul.mubr.f32.gmra.mrb[0].mxu0 %v1451
      %v1545 = vpop.f32.mrb[0].mxu0
      %v1546 = vadd.f32 0.0, %v1545
      %v1547 = vpop.f32.mrb[0].mxu0
      %1548 = vmatprep.mubr.f32.mxu0 0.0
      %1549 = vmatmul.mubr.f32.gmra.mrb[0].mxu0 %v1454
      %v1550 = vpop.f32.mrb[0].mxu0
      %v1551 = vadd.f32 0.0, %v1550
      %v1552 = vpop.f32.mrb[0].mxu0
      %1553 = vmatprep.mubr.f32.mxu0 0.0
      %1554 = vmatmul.mubr.f32.gmra.mrb[0].mxu0 %v1457
      %v1555 = vpop.f32.mrb[0].mxu0
      %v1556 = vadd.f32 0.0, %v1555
      %v1557 = vpop.f32.mrb[0].mxu0
      %1558 = vmatprep.mubr.f32.mxu0 0.0
      %1559 = vmatmul.mubr.f32.gmra.mrb[0].mxu0 %v1460
      %v1560 = vpop.f32.mrb[0].mxu0
      %v1561 = vadd.f32 0.0, %v1560
      %v1562 = vpop.f32.mrb[0].mxu0
      %1563 = vmatprep.mubr.f32.mxu0 0.0
      %1564 = vmatmul.mubr.f32.gmra.mrb[0].mxu0 %v1463
      %v1565 = vpop.f32.mrb[0].mxu0
      %v1566 = vadd.f32 0.0, %v1565
      %v1567 = vpop.f32.mrb[0].mxu0
      %1568 = vmatprep.mubr.f32.mxu0 0.0
      %1569 = vmatmul.mubr.f32.gmra.mrb[0].mxu0 %v1466
      %v1570 = vpop.f32.mrb[0].mxu0
      %v1571 = vadd.f32 0.0, %v1570
      %v1572 = vpop.f32.mrb[0].mxu0
      %1573 = vmatprep.mubr.f32.mxu0 0.0
      %1574 = vmatmul.mubr.f32.gmra.mrb[0].mxu0 %v1469
      %v1575 = vpop.f32.mrb[0].mxu0
      %v1576 = vadd.f32 0.0, %v1575
      %v1577 = vpop.f32.mrb[0].mxu0
      %1578 = vdwg.mxu0
      %v1579 = vadd.f32 %v1429, %v1541
      %v1580 = vadd.f32 %v1430, %v1546
      %v1581 = vadd.f32 %v1431, %v1551
      %v1582 = vadd.f32 %v1432, %v1556
      %v1583 = vadd.f32 %v1433, %v1561
      %v1584 = vadd.f32 %v1434, %v1566
      %v1585 = vadd.f32 %v1435, %v1571
      %v1586 = vadd.f32 %v1436, %v1576
      %v1587 = vld [vmem:[%s233] sm:$0x1]
      %v1589 = vlaneseq
      %v1590 = vshrl.u32 %v1589, 7
      %v1591 = vsub.s32 0, %v1590
      %v1592 = vrot.slane %v1587, %v1591
      %v1594 = vadd.f32 %v1579, %v1592
      %v1595 = vadd.f32 %v1580, %v1592
      %v1596 = vadd.f32 %v1581, %v1592
      %v1597 = vadd.f32 %v1582, %v1592
      %v1598 = vadd.f32 %v1583, %v1592
      %v1599 = vadd.f32 %v1584, %v1592
      %v1600 = vadd.f32 %v1585, %v1592
      %v1601 = vadd.f32 %v1586, %v1592
      %1602 = vst [vmem:[%s245] sm:$0xff] %v1594
      %1603 = vst [vmem:[%s245 + $0x8] sm:$0xff] %v1595
      %1604 = vst [vmem:[%s245 + $0x10] sm:$0xff] %v1596
      %1605 = vst [vmem:[%s245 + $0x18] sm:$0xff] %v1597
      %1606 = vst [vmem:[%s245 + $0x20] sm:$0xff] %v1598
      %1607 = vst [vmem:[%s245 + $0x28] sm:$0xff] %v1599
      %1608 = vst [vmem:[%s245 + $0x30] sm:$0xff] %v1600
      %1609 = vst [vmem:[%s245 + $0x38] sm:$0xff] %v1601
      %s1610 = smul.u32 8, %s21
      %p1611 = scmp.lt.s32.totalorder %s19, 1
      %s1612 = scalar_select %p1611, %s19, 1
      %p1613 = scmp.lt.s32.totalorder %s1610, 7
      %s1614 = scalar_select %p1613, %s1610, 7
      %p1615 = scmp.lt.s32.totalorder %s20, 0
      %s1616 = scalar_select %p1615, %s20, 0
      %s1617 = sadd.s32 %s1616, %s1614
      %s1618 = smul.addr %s1612, 8
      %s1619 = sadd.s32 %s1617, %s1618
      %s1620 = smul.addr %s1619, 8
      %s1621 = scalar_lea.vmem %s3, %s1620
      // Predicated region
      $region33: #{downsample_forward.1} parent=31 // pred_check
        %p1622 = pneg %p135
      $region34: #{downsample_forward.1} parent=31 // pred_check_branch
        %1624 = sbr.rel (%p1622) target = $region36
      $region35: #{downsample_forward.1} parent=31 // pred_region
        %s1625 = smul.u32 8, %s21
      $region36: #{downsample_forward.1} parent=31 // pred_fallthru
        _
    $region32: #{downsample_forward.1} parent=5 // pred_fallthru
      _
    %p1626 = scmp.le.s32.totalorder 2, %s9
    // Predicated region
    $region37: #{downsample_forward.1} parent=5 // pred_check
      %p1627 = pneg %p1626
    $region38: #{downsample_forward.1} parent=5 // pred_check_branch
      %1629 = sbr.rel (%p1627) target = $region40
    $region39: #{downsample_forward.1} parent=5 // pred_region
      %s1630 = ssub.s32 %s9, 2
      // Predicated region
      $region41: #{downsample_forward.1} parent=39 // pred_check
        %p1631 = pneg %p141
      $region42: #{downsample_forward.1} parent=39 // pred_check_branch
        %1633 = sbr.rel (%p1631) target = $region44
      $region43: #{downsample_forward.1} parent=39 // pred_region
        %s1634 = smul.u32 8, %s24
        %p1635 = scmp.lt.s32.totalorder %s22, 1
        %s1636 = scalar_select %p1635, %s22, 1
        %p1637 = scmp.lt.s32.totalorder %s1634, 7
        %s1638 = scalar_select %p1637, %s1634, 7
        %p1639 = scmp.lt.s32.totalorder %s23, 0
        %s1640 = scalar_select %p1639, %s23, 0
        %s1641 = sadd.s32 %s1640, %s1638
        %s1642 = smul.addr %s1636, 8
        %s1643 = sadd.s32 %s1641, %s1642
        %s1644 = smul.addr %s1643, 8
        %s1645 = scalar_lea.vmem %s3, %s1644
      $region44: #{downsample_forward.1} parent=39 // pred_fallthru
        _
    $region40: #{downsample_forward.1} parent=5 // pred_fallthru
      _
  $region6: #{downsample_forward.1} parent=0 // loop_footer
    %s13 = sadd.s32 1, %s9
  $region7: #{downsample_forward.1} parent=0 // loop_footer_branch
    %8 = sbr.rel target = $region3
  $region8: #{downsample_forward.1} parent=0 // loop_exit
    _

</llo_original>
